<compile_context>
chip_gen: v6e
topology: v6e:2x2x1
jax: 0.10.0
libtpu: 0.0.40
codegen_flags: <defaults>
</compile_context>

<pallas_src>
import functools

import jax
import jax.numpy as jnp
from jax.experimental import pallas as pl
from jax.experimental.pallas import tpu as pltpu


def _cdiv(a, b):
    return -(-a // b)


def _inv_res_kernel(*refs, H, W, h_tile, Wc, Cin, Chid, Cout,
                    has_expand, use_res, mxu_dtype):
    if has_expand:
        x_ref, w1_ref, b1_ref, wdw_ref, b2_ref, w3_ref, b3_ref, o_ref = refs
    else:
        x_ref, wdw_ref, b2_ref, w3_ref, b3_ref, o_ref = refs

    Hb = h_tile
    j = pl.program_id(1)
    r0 = pl.multiple_of(j * Hb, 8)                   # h_tile is a multiple of 8

    # Halo window: padded-image rows [r0, r0 + Hb + 2), all Wc padded columns.
    xb = x_ref[0, pl.ds(r0, Hb + 2), :, :]           # (Hb+2, Wc, Cin)

    # ---- 1x1 expand conv (pixel-major MXU matmul) + BN bias + ReLU6 --------------
    if has_expand:
        xm = xb.reshape((Hb + 2) * Wc, Cin).astype(mxu_dtype)
        z = jnp.dot(xm, w1_ref[...], preferred_element_type=jnp.float32)
        z = z.reshape(Hb + 2, Wc, Chid) + b1_ref[...].reshape(1, 1, Chid)
        # ReLU6 with the depthwise zero-padding requirement folded into the clip
        # upper bound: padded rows/cols get an upper bound of 0 -> exactly 0.
        gr = r0 + jax.lax.broadcasted_iota(jnp.int32, (Hb + 2, 1, 1), 0)
        gc = jax.lax.broadcasted_iota(jnp.int32, (1, Wc, 1), 1)
        keep = (((gr >= 1) & (gr <= H)).astype(jnp.float32) *
                ((gc >= 1) & (gc <= W)).astype(jnp.float32))
        h = jnp.minimum(jnp.maximum(z, 0.0), 6.0 * keep)
    else:
        h = xb.astype(jnp.float32)                   # padded rows/cols already 0

    # ---- 3x3 depthwise conv, stride 1, SAME (channels on lanes) ------------------
    # Column taps via pltpu.roll along the (sublane) W axis; the circular wrap lands
    # on zero-padded columns, so no boundary masking is needed, and the roll runs on
    # the XLU slot alongside the VPU multiply-add chain.  Shifts are taken per-dy on
    # the (Hb, Wc, Chid) row slice (no big persistent shifted temps).
    wdw = wdw_ref[...]                               # (9, Chid) f32, BN scale folded
    b2 = b2_ref[...].reshape(1, 1, Chid)
    acc = None
    for dy in range(3):
        hrow = h[dy:dy + Hb]                         # (Hb, Wc, Chid)
        for dx, shift in ((0, 1), (1, 0), (2, Wc - 1)):    # Wc-1 == roll by -1
            tap = hrow if shift == 0 else pltpu.roll(hrow, shift, axis=1)
            k = dy * 3 + dx
            t = tap * wdw[k:k + 1, :].reshape(1, 1, Chid)
            acc = (t + b2) if acc is None else (acc + t)   # b2 folded into init
    d = jnp.minimum(jnp.maximum(acc, 0.0), 6.0)      # ReLU6

    # ---- 1x1 project conv (pixel-major MXU matmul) + BN bias ----------------------
    dm = d.reshape(Hb * Wc, Chid).astype(mxu_dtype)
    y = jnp.dot(dm, w3_ref[...], preferred_element_type=jnp.float32)
    y = y.reshape(Hb, Wc, Cout) + b3_ref[...].reshape(1, 1, Cout)

    if use_res:
        y = y + xb[1:Hb + 1].astype(jnp.float32)     # same padded-column grid

    o_ref[0] = y.astype(o_ref.dtype)


def inverted_residual_bottleneck(x_nchw, params, *, stride, expand_ratio, inp, oup,
                                 h_tile=None, mxu_dtype=jnp.bfloat16):
    # TODO(synk): stride=2 TF-SAME depthwise path not implemented.
    assert stride == 1, "only stride=1 supported in this kernel"
    N, C, H, W = x_nchw.shape
    assert C == inp
    Chid = inp * expand_ratio
    has_expand = expand_ratio > 1
    use_res = (stride == 1) and (inp == oup)
    dt = x_nchw.dtype
    if mxu_dtype is None:
        mxu_dtype = dt

    # Padded column count: >= W + 2 (1-px halo each side) and a multiple of the
    # native sublane tile of the input dtype so the in-kernel merge/split reshapes
    # are layout-trivial and the roll wrap-around always lands on a zero column.
    sub = 8 * max(1, 4 // jnp.dtype(dt).itemsize)
    Wc = _cdiv(W + 2, sub) * sub

    # ---- per-generation VMEM sizing (v5e/v6e: 128 MiB, v7x: 64 MiB) ---------------
    try:
        vmem_cap = int(pltpu.get_tpu_info().vmem_capacity_bytes)
    except Exception:
        vmem_cap = 64 << 20                          # conservative (v7x) fallback
    vmem_limit = max(16 << 20, min(vmem_cap - (16 << 20), (3 * vmem_cap) // 4))

    # ---- pick the H-row tile (always a multiple of 8) ------------------------------
    if h_tile is None:
        per_row = 4 * Wc * (4 * Chid + inp + oup)    # rough f32 live bytes per row
        budget = max(vmem_limit // 6, 1 << 20)
        h_tile = max(8, min((budget // per_row) // 8 * 8, _cdiv(H, 8) * 8))
        # v7x megacore: expose >= 2 parallel grid steps when the batch alone doesn't.
        while N * _cdiv(H, h_tile) < 2 and h_tile > 8:
            h_tile = max(8, _cdiv(h_tile // 2, 8) * 8)
    else:
        h_tile = max(8, _cdiv(h_tile, 8) * 8)
    n_h = _cdiv(H, h_tile)
    H_pad = n_h * h_tile

    # ---- layout + BN folding (once-per-model wrapper glue) -------------------------
    # TODO(synk): NCHW<->NHWC relayout still happens as XLA transposes here.
    x = jnp.transpose(x_nchw, (0, 2, 3, 1))                         # NCHW -> NHWC
    xp = jnp.pad(x, ((0, 0), (1, 1 + H_pad - H), (1, Wc - W - 1), (0, 0)))

    f32 = jnp.float32
    vmem = pl.BlockSpec(memory_space=pltpu.MemorySpace.VMEM)
    in_specs = [pl.BlockSpec((1, H_pad + 2, Wc, inp), lambda n, j: (n, 0, 0, 0))]
    args = [xp]
    if has_expand:
        args += [(params["w1"] * params["s1"]).astype(mxu_dtype),
                 params["b1"].reshape(1, Chid).astype(f32)]
        in_specs += [vmem, vmem]
    args += [(params["wdw"] * params["s2"]).astype(f32),
             params["b2"].reshape(1, Chid).astype(f32),
             (params["w3"] * params["s3"]).astype(mxu_dtype),
             params["b3"].reshape(1, oup).astype(f32)]
    in_specs += [vmem, vmem, vmem, vmem]

    kernel = functools.partial(_inv_res_kernel, H=H, W=W, h_tile=h_tile, Wc=Wc,
                               Cin=inp, Chid=Chid, Cout=oup,
                               has_expand=has_expand, use_res=use_res,
                               mxu_dtype=mxu_dtype)

    tile_flops = 2 * 9 * h_tile * Wc * Chid + 2 * h_tile * Wc * Chid * oup
    if has_expand:
        tile_flops += 2 * (h_tile + 2) * Wc * inp * Chid
    flops = N * n_h * tile_flops
    bytes_accessed = sum(int(a.size) * a.dtype.itemsize for a in args)
    bytes_accessed += N * H_pad * Wc * oup * jnp.dtype(dt).itemsize

    out = pl.pallas_call(
        kernel,
        grid=(N, n_h),
        in_specs=in_specs,
        out_specs=pl.BlockSpec((1, h_tile, Wc, oup), lambda n, j: (n, j, 0, 0)),
        out_shape=jax.ShapeDtypeStruct((N, H_pad, Wc, oup), dt),
        compiler_params=pltpu.CompilerParams(
            dimension_semantics=("parallel", "parallel"),
            vmem_limit_bytes=int(vmem_limit)),
        cost_estimate=pl.CostEstimate(flops=int(flops), transcendentals=0,
                                      bytes_accessed=int(bytes_accessed)),
    )(*args)

    # drop the H/W padding, back to NCHW
    return jnp.transpose(out[:, :H, 1:W + 1, :], (0, 3, 1, 2))


def ref_forward(x_nchw, params, *, stride, expand_ratio, inp, oup):
    """Pure-JAX reference (lax.conv) mirroring the PyTorch module in eval mode."""
    x = jnp.transpose(x_nchw, (0, 2, 3, 1))
    Chid = inp * expand_ratio
    dn = ("NHWC", "HWIO", "NHWC")
    h = x
    if expand_ratio > 1:
        h = jax.lax.conv_general_dilated(
            x, params["w1"].reshape(1, 1, inp, Chid), (1, 1), "VALID",
            dimension_numbers=dn)
        h = jnp.clip(h * params["s1"] + params["b1"], 0.0, 6.0)
    d = jax.lax.conv_general_dilated(
        h, params["wdw"].reshape(3, 3, 1, Chid), (stride, stride), "SAME",
        dimension_numbers=dn, feature_group_count=Chid)
    d = jnp.clip(d * params["s2"] + params["b2"], 0.0, 6.0)
    y = jax.lax.conv_general_dilated(
        d, params["w3"].reshape(1, 1, Chid, oup), (1, 1), "VALID",
        dimension_numbers=dn)
    y = y * params["s3"] + params["b3"]
    if stride == 1 and inp == oup:
        y = y + x
    return jnp.transpose(y, (0, 3, 1, 2))


def _bn_fold(k, c, eps=1e-5):
    k1, k2, k3, k4 = jax.random.split(k, 4)
    gamma = jax.random.uniform(k1, (c,), jnp.float32, 0.5, 1.5)
    beta = 0.1 * jax.random.normal(k2, (c,), jnp.float32)
    mean = 0.1 * jax.random.normal(k3, (c,), jnp.float32)
    var = jax.random.uniform(k4, (c,), jnp.float32, 0.5, 1.5)
    scale = gamma / jnp.sqrt(var + eps)
    bias = beta - mean * scale
    return scale.reshape(1, c), bias.reshape(1, c)


def _make_params(key, inp, oup, expand_ratio):
    Chid = inp * expand_ratio
    ks = jax.random.split(key, 7)
    p = {}
    if expand_ratio > 1:
        p["w1"] = 0.3 * jax.random.normal(ks[0], (inp, Chid), jnp.float32)
        p["s1"], p["b1"] = _bn_fold(ks[1], Chid)
    p["wdw"] = 0.3 * jax.random.normal(ks[2], (9, Chid), jnp.float32)
    p["s2"], p["b2"] = _bn_fold(ks[3], Chid)
    p["w3"] = 0.3 * jax.random.normal(ks[4], (Chid, oup), jnp.float32)
    p["s3"], p["b3"] = _bn_fold(ks[5], oup)
    return p


if __name__ == "__main__":
    key = jax.random.PRNGKey(0)
    k_x1, k_p1, k_x2, k_p2, k_x3, k_p3 = jax.random.split(key, 6)

    # --- config 1: expand_ratio=2, residual, tiled grid (2, 2), exact f32 MXU path -
    N, inp, H, W = 2, 8, 16, 16
    oup, stride, er = 8, 1, 2
    x1 = jax.random.normal(k_x1, (N, inp, H, W), jnp.float32)
    p1 = _make_params(k_p1, inp, oup, er)
    out1 = inverted_residual_bottleneck(
        x1, p1, stride=stride, expand_ratio=er, inp=inp, oup=oup,
        h_tile=8, mxu_dtype=jnp.float32)
    out1 = jax.block_until_ready(out1)
    ref1 = ref_forward(x1, p1, stride=stride, expand_ratio=er, inp=inp, oup=oup)
    assert out1.shape == (N, oup, H, W)
    assert jnp.allclose(out1, ref1, atol=2e-4, rtol=2e-4), \
        float(jnp.max(jnp.abs(out1 - ref1)))

    # --- config 2: expand_ratio=1 (no expand conv, no residual), auto h_tile -------
    N2, inp2, oup2, er2 = 1, 8, 16, 1
    x2 = jax.random.normal(k_x2, (N2, inp2, H, W), jnp.float32)
    p2 = _make_params(k_p2, inp2, oup2, er2)
    out2 = inverted_residual_bottleneck(
        x2, p2, stride=1, expand_ratio=er2, inp=inp2, oup=oup2,
        mxu_dtype=jnp.float32)
    out2 = jax.block_until_ready(out2)
    ref2 = ref_forward(x2, p2, stride=1, expand_ratio=er2, inp=inp2, oup=oup2)
    assert out2.shape == (N2, oup2, H, W)
    assert jnp.allclose(out2, ref2, atol=2e-4, rtol=2e-4), \
        float(jnp.max(jnp.abs(out2 - ref2)))

    # --- config 3: expand_ratio=6, default bf16 MXU fast path, relative-norm check -
    N3, inp3, oup3, er3 = 2, 8, 16, 6
    x3 = jax.random.normal(k_x3, (N3, inp3, H, W), jnp.float32)
    p3 = _make_params(k_p3, inp3, oup3, er3)
    out3 = inverted_residual_bottleneck(
        x3, p3, stride=1, expand_ratio=er3, inp=inp3, oup=oup3)  # bf16 operands
    out3 = jax.block_until_ready(out3)
    ref3 = ref_forward(x3, p3, stride=1, expand_ratio=er3, inp=inp3, oup=oup3)
    assert out3.shape == (N3, oup3, H, W)
    rel = float(jnp.linalg.norm((out3 - ref3).astype(jnp.float32)) /
                jnp.linalg.norm(ref3.astype(jnp.float32)))
    assert rel < 4e-2, rel

    print("KERNEL_OK")
</pallas_src>

<mosaic_0001>
module attributes {stable_mosaic.version = 11 : i64} {
  func.func @_inv_res_kernel(%arg0: i32, %arg1: i32, %arg2: memref<1x18x24x8xf32, #tpu.memory_space<vmem>>, %arg3: memref<8x16xf32, #tpu.memory_space<vmem>>, %arg4: memref<1x16xf32, #tpu.memory_space<vmem>>, %arg5: memref<9x16xf32, #tpu.memory_space<vmem>>, %arg6: memref<1x16xf32, #tpu.memory_space<vmem>>, %arg7: memref<16x8xf32, #tpu.memory_space<vmem>>, %arg8: memref<1x8xf32, #tpu.memory_space<vmem>>, %arg9: memref<1x8x24x8xf32, #tpu.memory_space<vmem>>) attributes {dimension_semantics = [#tpu.dimension_semantics<parallel>, #tpu.dimension_semantics<parallel>], iteration_bounds = array<i64: 2, 2>, scalar_prefetch = 0 : i64, scratch_operands = 0 : i64, tpu.core_type = #tpu.core_type<tc>, window_params = [{transform_indices = @transform_0, window_bounds = array<i64: 1, 18, 24, 8>}, {pipeline_mode = #tpu.pipeline_mode<synchronous>, transform_indices = @transform_1, window_bounds = array<i64: 8, 16>}, {pipeline_mode = #tpu.pipeline_mode<synchronous>, transform_indices = @transform_2, window_bounds = array<i64: 1, 16>}, {pipeline_mode = #tpu.pipeline_mode<synchronous>, transform_indices = @transform_3, window_bounds = array<i64: 9, 16>}, {pipeline_mode = #tpu.pipeline_mode<synchronous>, transform_indices = @transform_4, window_bounds = array<i64: 1, 16>}, {pipeline_mode = #tpu.pipeline_mode<synchronous>, transform_indices = @transform_5, window_bounds = array<i64: 16, 8>}, {pipeline_mode = #tpu.pipeline_mode<synchronous>, transform_indices = @transform_6, window_bounds = array<i64: 1, 8>}, {transform_indices = @transform_7, window_bounds = array<i64: 1, 8, 24, 8>}]} {
    %c8_i32 = arith.constant 8 : i32
    %0 = arith.muli %arg1, %c8_i32 : i32
    %1 = tpu.assume_multiple %0, 8 : i32
    %c0 = arith.constant 0 : index
    %2 = arith.index_cast %1 : i32 to index
    %c0_0 = arith.constant 0 : index
    %c0_1 = arith.constant 0 : index
    %3 = vector.load %arg2[%c0, %2, %c0_0, %c0_1] : memref<1x18x24x8xf32, #tpu.memory_space<vmem>>, vector<1x10x24x8xf32>
    %4 = vector.shape_cast %3 : vector<1x10x24x8xf32> to vector<10x24x8xf32>
    %5 = vector.shape_cast %4 : vector<10x24x8xf32> to vector<240x8xf32>
    %c0_2 = arith.constant 0 : index
    %c0_3 = arith.constant 0 : index
    %6 = vector.load %arg3[%c0_2, %c0_3] : memref<8x16xf32, #tpu.memory_space<vmem>>, vector<8x16xf32>
    %cst = arith.constant dense<0.000000e+00> : vector<240x16xf32>
    %7 = tpu.matmul %5, %6, %cst {dimension_numbers = #tpu.dot_dimension_numbers<[1], [0], [0], [1], [0, 0, 1, 1], [], []>} : vector<240x8xf32>, vector<8x16xf32>, vector<240x16xf32> -> vector<240x16xf32>
    %8 = vector.shape_cast %7 : vector<240x16xf32> to vector<10x24x16xf32>
    %c0_4 = arith.constant 0 : index
    %c0_5 = arith.constant 0 : index
    %9 = vector.load %arg4[%c0_4, %c0_5] : memref<1x16xf32, #tpu.memory_space<vmem>>, vector<1x16xf32>
    %10 = vector.shape_cast %9 : vector<1x16xf32> to vector<1x1x16xf32>
    %11 = vector.broadcast %10 : vector<1x1x16xf32> to vector<10x24x16xf32>
    %12 = arith.addf %8, %11 : vector<10x24x16xf32>
    %13 = tpu.iota {dimensions = array<i32: 0>} : vector<10x1x1xi32>
    %14 = vector.broadcast %1 : i32 to vector<10x1x1xi32>
    %15 = arith.addi %14, %13 : vector<10x1x1xi32>
    %16 = tpu.iota {dimensions = array<i32: 1>} : vector<1x24x1xi32>
    %c1_i32 = arith.constant 1 : i32
    %17 = vector.broadcast %c1_i32 : i32 to vector<10x1x1xi32>
    %18 = arith.cmpi sge, %15, %17 : vector<10x1x1xi32>
    %c16_i32 = arith.constant 16 : i32
    %19 = vector.broadcast %c16_i32 : i32 to vector<10x1x1xi32>
    %20 = arith.cmpi sle, %15, %19 : vector<10x1x1xi32>
    %21 = arith.andi %18, %20 : vector<10x1x1xi1>
    %22 = arith.extui %21 : vector<10x1x1xi1> to vector<10x1x1xi32>
    %23 = arith.sitofp %22 : vector<10x1x1xi32> to vector<10x1x1xf32>
    %c1_i32_6 = arith.constant 1 : i32
    %24 = vector.broadcast %c1_i32_6 : i32 to vector<1x24x1xi32>
    %25 = arith.cmpi sge, %16, %24 : vector<1x24x1xi32>
    %c16_i32_7 = arith.constant 16 : i32
    %26 = vector.broadcast %c16_i32_7 : i32 to vector<1x24x1xi32>
    %27 = arith.cmpi sle, %16, %26 : vector<1x24x1xi32>
    %28 = arith.andi %25, %27 : vector<1x24x1xi1>
    %29 = arith.extui %28 : vector<1x24x1xi1> to vector<1x24x1xi32>
    %30 = arith.sitofp %29 : vector<1x24x1xi32> to vector<1x24x1xf32>
    %31 = vector.broadcast %23 : vector<10x1x1xf32> to vector<10x24x1xf32>
    %32 = vector.broadcast %30 : vector<1x24x1xf32> to vector<10x24x1xf32>
    %33 = arith.mulf %31, %32 : vector<10x24x1xf32>
    %cst_8 = arith.constant 0.000000e+00 : f32
    %34 = vector.broadcast %cst_8 : f32 to vector<10x24x16xf32>
    %35 = arith.maximumf %12, %34 : vector<10x24x16xf32>
    %cst_9 = arith.constant 6.000000e+00 : f32
    %36 = vector.broadcast %cst_9 : f32 to vector<10x24x1xf32>
    %37 = arith.mulf %36, %33 : vector<10x24x1xf32>
    %38 = vector.broadcast %37 : vector<10x24x1xf32> to vector<10x24x16xf32>
    %39 = arith.minimumf %35, %38 : vector<10x24x16xf32>
    %c0_10 = arith.constant 0 : index
    %c0_11 = arith.constant 0 : index
    %40 = vector.load %arg5[%c0_10, %c0_11] : memref<9x16xf32, #tpu.memory_space<vmem>>, vector<9x16xf32>
    %c0_12 = arith.constant 0 : index
    %c0_13 = arith.constant 0 : index
    %41 = vector.load %arg6[%c0_12, %c0_13] : memref<1x16xf32, #tpu.memory_space<vmem>>, vector<1x16xf32>
    %42 = vector.shape_cast %41 : vector<1x16xf32> to vector<1x1x16xf32>
    %43 = vector.extract_strided_slice %39 {offsets = [0, 0, 0], sizes = [8, 24, 16], strides = [1, 1, 1]} : vector<10x24x16xf32> to vector<8x24x16xf32>
    %c1_i32_14 = arith.constant 1 : i32
    %44 = tpu.dynamic_rotate %43 by %c1_i32_14 dim 1 : vector<8x24x16xf32>, i32 -> vector<8x24x16xf32>
    %45 = vector.extract_strided_slice %40 {offsets = [0, 0], sizes = [1, 16], strides = [1, 1]} : vector<9x16xf32> to vector<1x16xf32>
    %46 = vector.shape_cast %45 : vector<1x16xf32> to vector<1x1x16xf32>
    %47 = vector.broadcast %46 : vector<1x1x16xf32> to vector<8x24x16xf32>
    %48 = arith.mulf %44, %47 : vector<8x24x16xf32>
    %49 = vector.broadcast %42 : vector<1x1x16xf32> to vector<8x24x16xf32>
    %50 = arith.addf %48, %49 : vector<8x24x16xf32>
    %51 = vector.extract_strided_slice %40 {offsets = [1, 0], sizes = [1, 16], strides = [1, 1]} : vector<9x16xf32> to vector<1x16xf32>
    %52 = vector.shape_cast %51 : vector<1x16xf32> to vector<1x1x16xf32>
    %53 = vector.broadcast %52 : vector<1x1x16xf32> to vector<8x24x16xf32>
    %54 = arith.mulf %43, %53 : vector<8x24x16xf32>
    %55 = arith.addf %50, %54 : vector<8x24x16xf32>
    %c23_i32 = arith.constant 23 : i32
    %56 = tpu.dynamic_rotate %43 by %c23_i32 dim 1 : vector<8x24x16xf32>, i32 -> vector<8x24x16xf32>
    %57 = vector.extract_strided_slice %40 {offsets = [2, 0], sizes = [1, 16], strides = [1, 1]} : vector<9x16xf32> to vector<1x16xf32>
    %58 = vector.shape_cast %57 : vector<1x16xf32> to vector<1x1x16xf32>
    %59 = vector.broadcast %58 : vector<1x1x16xf32> to vector<8x24x16xf32>
    %60 = arith.mulf %56, %59 : vector<8x24x16xf32>
    %61 = arith.addf %55, %60 : vector<8x24x16xf32>
    %62 = vector.extract_strided_slice %39 {offsets = [1, 0, 0], sizes = [8, 24, 16], strides = [1, 1, 1]} : vector<10x24x16xf32> to vector<8x24x16xf32>
    %c1_i32_15 = arith.constant 1 : i32
    %63 = tpu.dynamic_rotate %62 by %c1_i32_15 dim 1 : vector<8x24x16xf32>, i32 -> vector<8x24x16xf32>
    %64 = vector.extract_strided_slice %40 {offsets = [3, 0], sizes = [1, 16], strides = [1, 1]} : vector<9x16xf32> to vector<1x16xf32>
    %65 = vector.shape_cast %64 : vector<1x16xf32> to vector<1x1x16xf32>
    %66 = vector.broadcast %65 : vector<1x1x16xf32> to vector<8x24x16xf32>
    %67 = arith.mulf %63, %66 : vector<8x24x16xf32>
    %68 = arith.addf %61, %67 : vector<8x24x16xf32>
    %69 = vector.extract_strided_slice %40 {offsets = [4, 0], sizes = [1, 16], strides = [1, 1]} : vector<9x16xf32> to vector<1x16xf32>
    %70 = vector.shape_cast %69 : vector<1x16xf32> to vector<1x1x16xf32>
    %71 = vector.broadcast %70 : vector<1x1x16xf32> to vector<8x24x16xf32>
    %72 = arith.mulf %62, %71 : vector<8x24x16xf32>
    %73 = arith.addf %68, %72 : vector<8x24x16xf32>
    %c23_i32_16 = arith.constant 23 : i32
    %74 = tpu.dynamic_rotate %62 by %c23_i32_16 dim 1 : vector<8x24x16xf32>, i32 -> vector<8x24x16xf32>
    %75 = vector.extract_strided_slice %40 {offsets = [5, 0], sizes = [1, 16], strides = [1, 1]} : vector<9x16xf32> to vector<1x16xf32>
    %76 = vector.shape_cast %75 : vector<1x16xf32> to vector<1x1x16xf32>
    %77 = vector.broadcast %76 : vector<1x1x16xf32> to vector<8x24x16xf32>
    %78 = arith.mulf %74, %77 : vector<8x24x16xf32>
    %79 = arith.addf %73, %78 : vector<8x24x16xf32>
    %80 = vector.extract_strided_slice %39 {offsets = [2, 0, 0], sizes = [8, 24, 16], strides = [1, 1, 1]} : vector<10x24x16xf32> to vector<8x24x16xf32>
    %c1_i32_17 = arith.constant 1 : i32
    %81 = tpu.dynamic_rotate %80 by %c1_i32_17 dim 1 : vector<8x24x16xf32>, i32 -> vector<8x24x16xf32>
    %82 = vector.extract_strided_slice %40 {offsets = [6, 0], sizes = [1, 16], strides = [1, 1]} : vector<9x16xf32> to vector<1x16xf32>
    %83 = vector.shape_cast %82 : vector<1x16xf32> to vector<1x1x16xf32>
    %84 = vector.broadcast %83 : vector<1x1x16xf32> to vector<8x24x16xf32>
    %85 = arith.mulf %81, %84 : vector<8x24x16xf32>
    %86 = arith.addf %79, %85 : vector<8x24x16xf32>
    %87 = vector.extract_strided_slice %40 {offsets = [7, 0], sizes = [1, 16], strides = [1, 1]} : vector<9x16xf32> to vector<1x16xf32>
    %88 = vector.shape_cast %87 : vector<1x16xf32> to vector<1x1x16xf32>
    %89 = vector.broadcast %88 : vector<1x1x16xf32> to vector<8x24x16xf32>
    %90 = arith.mulf %80, %89 : vector<8x24x16xf32>
    %91 = arith.addf %86, %90 : vector<8x24x16xf32>
    %c23_i32_18 = arith.constant 23 : i32
    %92 = tpu.dynamic_rotate %80 by %c23_i32_18 dim 1 : vector<8x24x16xf32>, i32 -> vector<8x24x16xf32>
    %93 = vector.extract_strided_slice %40 {offsets = [8, 0], sizes = [1, 16], strides = [1, 1]} : vector<9x16xf32> to vector<1x16xf32>
    %94 = vector.shape_cast %93 : vector<1x16xf32> to vector<1x1x16xf32>
    %95 = vector.broadcast %94 : vector<1x1x16xf32> to vector<8x24x16xf32>
    %96 = arith.mulf %92, %95 : vector<8x24x16xf32>
    %97 = arith.addf %91, %96 : vector<8x24x16xf32>
    %cst_19 = arith.constant 0.000000e+00 : f32
    %98 = vector.broadcast %cst_19 : f32 to vector<8x24x16xf32>
    %99 = arith.maximumf %97, %98 : vector<8x24x16xf32>
    %cst_20 = arith.constant 6.000000e+00 : f32
    %100 = vector.broadcast %cst_20 : f32 to vector<8x24x16xf32>
    %101 = arith.minimumf %99, %100 : vector<8x24x16xf32>
    %102 = vector.shape_cast %101 : vector<8x24x16xf32> to vector<192x16xf32>
    %c0_21 = arith.constant 0 : index
    %c0_22 = arith.constant 0 : index
    %103 = vector.load %arg7[%c0_21, %c0_22] : memref<16x8xf32, #tpu.memory_space<vmem>>, vector<16x8xf32>
    %cst_23 = arith.constant dense<0.000000e+00> : vector<192x8xf32>
    %104 = tpu.matmul %102, %103, %cst_23 {dimension_numbers = #tpu.dot_dimension_numbers<[1], [0], [0], [1], [0, 0, 1, 1], [], []>} : vector<192x16xf32>, vector<16x8xf32>, vector<192x8xf32> -> vector<192x8xf32>
    %105 = vector.shape_cast %104 : vector<192x8xf32> to vector<8x24x8xf32>
    %c0_24 = arith.constant 0 : index
    %c0_25 = arith.constant 0 : index
    %106 = vector.load %arg8[%c0_24, %c0_25] : memref<1x8xf32, #tpu.memory_space<vmem>>, vector<1x8xf32>
    %107 = vector.shape_cast %106 : vector<1x8xf32> to vector<1x1x8xf32>
    %108 = vector.broadcast %107 : vector<1x1x8xf32> to vector<8x24x8xf32>
    %109 = arith.addf %105, %108 : vector<8x24x8xf32>
    %110 = vector.extract_strided_slice %4 {offsets = [1, 0, 0], sizes = [8, 24, 8], strides = [1, 1, 1]} : vector<10x24x8xf32> to vector<8x24x8xf32>
    %111 = arith.addf %109, %110 : vector<8x24x8xf32>
    %c0_26 = arith.constant 0 : index
    %c0_27 = arith.constant 0 : index
    %c0_28 = arith.constant 0 : index
    %c0_29 = arith.constant 0 : index
    %112 = vector.load %arg9[%c0_26, %c0_27, %c0_28, %c0_29] : memref<1x8x24x8xf32, #tpu.memory_space<vmem>>, vector<1x8x24x8xf32>
    %113 = vector.shape_cast %112 : vector<1x8x24x8xf32> to vector<8x24x8xf32>
    %114 = vector.shape_cast %111 : vector<8x24x8xf32> to vector<1x8x24x8xf32>
    tpu.vector_store %arg9[%c0_26, %c0_27, %c0_28, %c0_29], %114 {strides = array<i32>} : memref<1x8x24x8xf32, #tpu.memory_space<vmem>>, vector<1x8x24x8xf32>,
    return
  }
  func.func @transform_0(%arg0: i32, %arg1: i32) -> (i32, i32, i32, i32) {
    %c0_i32 = arith.constant 0 : i32
    %c0_i32_0 = arith.constant 0 : i32
    %c0_i32_1 = arith.constant 0 : i32
    %c0_i32_2 = arith.constant 0 : i32
    return %arg0, %c0_i32, %c0_i32_0, %c0_i32_1 : i32, i32, i32, i32
  }
  func.func @transform_1(%arg0: i32, %arg1: i32) -> (i32, i32) {
    %c0_i32 = arith.constant 0 : i32
    %c0_i32_0 = arith.constant 0 : i32
    %c0_i32_1 = arith.constant 0 : i32
    return %c0_i32, %c0_i32_0 : i32, i32
  }
  func.func @transform_2(%arg0: i32, %arg1: i32) -> (i32, i32) {
    %c0_i32 = arith.constant 0 : i32
    %c0_i32_0 = arith.constant 0 : i32
    %c0_i32_1 = arith.constant 0 : i32
    return %c0_i32, %c0_i32_0 : i32, i32
  }
  func.func @transform_3(%arg0: i32, %arg1: i32) -> (i32, i32) {
    %c0_i32 = arith.constant 0 : i32
    %c0_i32_0 = arith.constant 0 : i32
    %c0_i32_1 = arith.constant 0 : i32
    return %c0_i32, %c0_i32_0 : i32, i32
  }
  func.func @transform_4(%arg0: i32, %arg1: i32) -> (i32, i32) {
    %c0_i32 = arith.constant 0 : i32
    %c0_i32_0 = arith.constant 0 : i32
    %c0_i32_1 = arith.constant 0 : i32
    return %c0_i32, %c0_i32_0 : i32, i32
  }
  func.func @transform_5(%arg0: i32, %arg1: i32) -> (i32, i32) {
    %c0_i32 = arith.constant 0 : i32
    %c0_i32_0 = arith.constant 0 : i32
    %c0_i32_1 = arith.constant 0 : i32
    return %c0_i32, %c0_i32_0 : i32, i32
  }
  func.func @transform_6(%arg0: i32, %arg1: i32) -> (i32, i32) {
    %c0_i32 = arith.constant 0 : i32
    %c0_i32_0 = arith.constant 0 : i32
    %c0_i32_1 = arith.constant 0 : i32
    return %c0_i32, %c0_i32_0 : i32, i32
  }
  func.func @transform_7(%arg0: i32, %arg1: i32) -> (i32, i32, i32, i32) {
    %c0_i32 = arith.constant 0 : i32
    %c0_i32_0 = arith.constant 0 : i32
    %c0_i32_1 = arith.constant 0 : i32
    return %arg0, %arg1, %c0_i32, %c0_i32_0 : i32, i32, i32, i32
  }
}

</mosaic_0001>

<llo_original>
// kernel: tpu_custom_call.1
$region0: #{tpu_custom_call.1}
  #allocation0 [shape = 'u32[]', space=smem, size = 0x4, offset = 0x4, fixed_abs, tag = 'smem constant byte address 0x4 - core index']
  #allocation1 [shape = 'u32[144,128]{1,0:T(1,128)}', space=vmem, size = 0x12000, scoped, tag = 'internal scratch']
  %s0 = inlined_call_operand.vmem [shape: f32[2,18,24,8], index: 0, kind: input, shape index: {}]
  %s1 = inlined_call_operand.vmem [shape: f32[8,16], index: 1, kind: input, shape index: {}]
  %s2 = inlined_call_operand.vmem [shape: f32[1,16], index: 2, kind: input, shape index: {}]
  %s3 = inlined_call_operand.vmem [shape: f32[9,16], index: 3, kind: input, shape index: {}]
  %s4 = inlined_call_operand.vmem [shape: f32[1,16], index: 4, kind: input, shape index: {}]
  %s5 = inlined_call_operand.vmem [shape: f32[16,8], index: 5, kind: input, shape index: {}]
  %s6 = inlined_call_operand.vmem [shape: f32[1,8], index: 6, kind: input, shape index: {}]
  %s7 = inlined_call_operand.vmem [shape: f32[2,16,24,8], index: 7, kind: output, shape index: {}]
  %s8 = sld [smem:[#allocation0]]
  $region61: #{tpu_custom_call.1} parent=0
    _
  %s10 = ssub.s32 1, %s8
  %s11 = scalar_select 0, %s10, %s8
  loop: start=0, step=1, limit=6
  $region2: #{tpu_custom_call.1} parent=0 // loop_pre_header
    _
  $region3: #{tpu_custom_call.1} parent=0 // loop_header
    %s13 = sphi 0, %s17
    %p14 = scmp.ge.s32.totalorder %s13, 6
    %s20 = sphi 0, %s32
    %s21 = sphi 0, %s28
    %s22 = sphi 0, %s20
    %s23 = sphi 0, %s21
    %s24 = sphi 0, %s22
    %s25 = sphi 0, %s23
    %s35 = sphi 0, %s37
    %s38 = sphi 0, %s35
    %s39 = sphi 0, %s38
    %s55 = sphi 0, %s39
    %s59 = sphi 0, %s59
    %s61 = sphi 0, %s59
    %s62 = sphi 0, %s61
    %s76 = sphi 0, %s62
    %s80 = sphi 0, %s80
    %s82 = sphi 0, %s80
    %s83 = sphi 0, %s82
    %s97 = sphi 0, %s83
    %s101 = sphi 0, %s101
    %s103 = sphi 0, %s101
    %s104 = sphi 0, %s103
    %s118 = sphi 0, %s104
    %s122 = sphi 0, %s122
    %s124 = sphi 0, %s122
    %s125 = sphi 0, %s124
    %s139 = sphi 0, %s125
    %s143 = sphi 0, %s143
    %s145 = sphi 0, %s143
    %s146 = sphi 0, %s145
    %s160 = sphi 0, %s146
    %s164 = sphi 0, %s164
    %s166 = sphi 0, %s164
    %s167 = sphi 0, %s166
    %s181 = sphi 0, %s167
    %s189 = sphi 0, %s191
    %s192 = sphi 0, %s189
    %s193 = sphi 0, %s192
    %s209 = sphi 0, %s193
  $region4: #{tpu_custom_call.1} parent=0 // loop_header_branch
    %16 = sbr.rel (%p14) target = $region8
  $region5: #{tpu_custom_call.1} parent=0 // loop_body
    %s18 = ssub.s32 %s13, 1
    %s19 = ssub.s32 %s13, 2
    %s26 = sadd.s32 1, %s21
    %p27 = scmp.ge.s32.totalorder %s26, 2
    %s28 = scalar_select %p27, 0, %s26
    %s29 = sadd.s32 1, %s20
    %s30 = scalar_select %p27, %s29, %s20
    %p31 = scmp.ge.s32.totalorder %s30, 2
    %s32 = scalar_select %p31, 0, %s30
    %s33 = ssub.s32 %s20, %s32
    %p34 = scmp.eq.s32.totalorder %s33, 0
    %s36 = sadd.s32 %s35, 1
    %s37 = scalar_select %p34, %s35, %s36
    %p40 = pneg %p34
    %p41 = scmp.eq.s32.totalorder %s13, 3
    %p42 = por %p40, %p41
    %p43 = scmp.ne.s32.totalorder %s35, %s38
    %p44 = scmp.eq.s32.totalorder %s13, 0
    %p45 = por %p43, %p44
    %p46 = scmp.ne.s32.totalorder %s35, %s38
    %p47 = scmp.eq.s32.totalorder %s18, 3
    %p48 = por %p46, %p47
    %p49 = scmp.ne.s32.totalorder %s38, %s39
    %p50 = scmp.eq.s32.totalorder %s18, 0
    %p51 = por %p49, %p50
    %p52 = scmp.ne.s32.totalorder %s38, %s39
    %p53 = scmp.eq.s32.totalorder %s19, 3
    %p54 = por %p52, %p53
    %p56 = scmp.ne.s32.totalorder %s39, %s55
    %p57 = scmp.eq.s32.totalorder %s19, 0
    %p58 = por %p56, %p57
    %s60 = sadd.s32 %s59, 1
    %p63 = scmp.eq.s32.totalorder %s13, 3
    %p64 = scmp.ne.s32.totalorder %s59, %s61
    %p65 = scmp.eq.s32.totalorder %s13, 0
    %p66 = por %p64, %p65
    %p67 = scmp.ne.s32.totalorder %s59, %s61
    %p68 = scmp.eq.s32.totalorder %s18, 3
    %p69 = por %p67, %p68
    %p70 = scmp.ne.s32.totalorder %s61, %s62
    %p71 = scmp.eq.s32.totalorder %s18, 0
    %p72 = por %p70, %p71
    %p73 = scmp.ne.s32.totalorder %s61, %s62
    %p74 = scmp.eq.s32.totalorder %s19, 3
    %p75 = por %p73, %p74
    %p77 = scmp.ne.s32.totalorder %s62, %s76
    %p78 = scmp.eq.s32.totalorder %s19, 0
    %p79 = por %p77, %p78
    %s81 = sadd.s32 %s80, 1
    %p84 = scmp.eq.s32.totalorder %s13, 3
    %p85 = scmp.ne.s32.totalorder %s80, %s82
    %p86 = scmp.eq.s32.totalorder %s13, 0
    %p87 = por %p85, %p86
    %p88 = scmp.ne.s32.totalorder %s80, %s82
    %p89 = scmp.eq.s32.totalorder %s18, 3
    %p90 = por %p88, %p89
    %p91 = scmp.ne.s32.totalorder %s82, %s83
    %p92 = scmp.eq.s32.totalorder %s18, 0
    %p93 = por %p91, %p92
    %p94 = scmp.ne.s32.totalorder %s82, %s83
    %p95 = scmp.eq.s32.totalorder %s19, 3
    %p96 = por %p94, %p95
    %p98 = scmp.ne.s32.totalorder %s83, %s97
    %p99 = scmp.eq.s32.totalorder %s19, 0
    %p100 = por %p98, %p99
    %s102 = sadd.s32 %s101, 1
    %p105 = scmp.eq.s32.totalorder %s13, 3
    %p106 = scmp.ne.s32.totalorder %s101, %s103
    %p107 = scmp.eq.s32.totalorder %s13, 0
    %p108 = por %p106, %p107
    %p109 = scmp.ne.s32.totalorder %s101, %s103
    %p110 = scmp.eq.s32.totalorder %s18, 3
    %p111 = por %p109, %p110
    %p112 = scmp.ne.s32.totalorder %s103, %s104
    %p113 = scmp.eq.s32.totalorder %s18, 0
    %p114 = por %p112, %p113
    %p115 = scmp.ne.s32.totalorder %s103, %s104
    %p116 = scmp.eq.s32.totalorder %s19, 3
    %p117 = por %p115, %p116
    %p119 = scmp.ne.s32.totalorder %s104, %s118
    %p120 = scmp.eq.s32.totalorder %s19, 0
    %p121 = por %p119, %p120
    %s123 = sadd.s32 %s122, 1
    %p126 = scmp.eq.s32.totalorder %s13, 3
    %p127 = scmp.ne.s32.totalorder %s122, %s124
    %p128 = scmp.eq.s32.totalorder %s13, 0
    %p129 = por %p127, %p128
    %p130 = scmp.ne.s32.totalorder %s122, %s124
    %p131 = scmp.eq.s32.totalorder %s18, 3
    %p132 = por %p130, %p131
    %p133 = scmp.ne.s32.totalorder %s124, %s125
    %p134 = scmp.eq.s32.totalorder %s18, 0
    %p135 = por %p133, %p134
    %p136 = scmp.ne.s32.totalorder %s124, %s125
    %p137 = scmp.eq.s32.totalorder %s19, 3
    %p138 = por %p136, %p137
    %p140 = scmp.ne.s32.totalorder %s125, %s139
    %p141 = scmp.eq.s32.totalorder %s19, 0
    %p142 = por %p140, %p141
    %s144 = sadd.s32 %s143, 1
    %p147 = scmp.eq.s32.totalorder %s13, 3
    %p148 = scmp.ne.s32.totalorder %s143, %s145
    %p149 = scmp.eq.s32.totalorder %s13, 0
    %p150 = por %p148, %p149
    %p151 = scmp.ne.s32.totalorder %s143, %s145
    %p152 = scmp.eq.s32.totalorder %s18, 3
    %p153 = por %p151, %p152
    %p154 = scmp.ne.s32.totalorder %s145, %s146
    %p155 = scmp.eq.s32.totalorder %s18, 0
    %p156 = por %p154, %p155
    %p157 = scmp.ne.s32.totalorder %s145, %s146
    %p158 = scmp.eq.s32.totalorder %s19, 3
    %p159 = por %p157, %p158
    %p161 = scmp.ne.s32.totalorder %s146, %s160
    %p162 = scmp.eq.s32.totalorder %s19, 0
    %p163 = por %p161, %p162
    %s165 = sadd.s32 %s164, 1
    %p168 = scmp.eq.s32.totalorder %s13, 3
    %p169 = scmp.ne.s32.totalorder %s164, %s166
    %p170 = scmp.eq.s32.totalorder %s13, 0
    %p171 = por %p169, %p170
    %p172 = scmp.ne.s32.totalorder %s164, %s166
    %p173 = scmp.eq.s32.totalorder %s18, 3
    %p174 = por %p172, %p173
    %p175 = scmp.ne.s32.totalorder %s166, %s167
    %p176 = scmp.eq.s32.totalorder %s18, 0
    %p177 = por %p175, %p176
    %p178 = scmp.ne.s32.totalorder %s166, %s167
    %p179 = scmp.eq.s32.totalorder %s19, 3
    %p180 = por %p178, %p179
    %p182 = scmp.ne.s32.totalorder %s167, %s181
    %p183 = scmp.eq.s32.totalorder %s19, 0
    %p184 = por %p182, %p183
    %s185 = ssub.s32 %s20, %s32
    %s186 = ssub.s32 %s21, %s28
    %s187 = sor.u32 %s185, %s186
    %p188 = scmp.eq.s32.totalorder %s187, 0
    %s190 = sadd.s32 %s189, 1
    %s191 = scalar_select %p188, %s189, %s190
    %p194 = pneg %p188
    %p195 = scmp.eq.s32.totalorder %s13, 3
    %p196 = por %p194, %p195
    %p197 = scmp.ne.s32.totalorder %s189, %s192
    %p198 = scmp.eq.s32.totalorder %s13, 0
    %p199 = por %p197, %p198
    %p200 = scmp.ne.s32.totalorder %s189, %s192
    %p201 = scmp.eq.s32.totalorder %s18, 3
    %p202 = por %p200, %p201
    %p203 = scmp.ne.s32.totalorder %s192, %s193
    %p204 = scmp.eq.s32.totalorder %s18, 0
    %p205 = por %p203, %p204
    %p206 = scmp.ne.s32.totalorder %s192, %s193
    %p207 = scmp.eq.s32.totalorder %s19, 3
    %p208 = por %p206, %p207
    %p210 = scmp.ne.s32.totalorder %s193, %s209
    %p211 = scmp.eq.s32.totalorder %s19, 0
    %p212 = por %p210, %p211
    %p213 = scmp.le.s32.totalorder 1, %s13
    %p214 = scmp.lt.s32.totalorder %s13, 5
    %p215 = pnand %p213, %p214
    %p216 = pneg %p215
    // Predicated region
    $region9: #{tpu_custom_call.1} parent=5 // pred_check
      _
    $region10: #{tpu_custom_call.1} parent=5 // pred_check_branch
      %218 = sbr.rel (%p215) target = $region12
    $region11: #{tpu_custom_call.1} parent=5 // pred_region
      %s219 = ssub.s32 %s13, 1
      // Predicated region
      $region13: #{tpu_custom_call.1} parent=11 // pred_check
        %p220 = pneg %p72
      $region14: #{tpu_custom_call.1} parent=11 // pred_check_branch
        %222 = sbr.rel (%p220) target = $region16
      $region15: #{tpu_custom_call.1} parent=11 // pred_region
        _
      $region16: #{tpu_custom_call.1} parent=11 // pred_fallthru
        _
      // Predicated region
      $region17: #{tpu_custom_call.1} parent=11 // pred_check
        %p223 = pneg %p93
      $region18: #{tpu_custom_call.1} parent=11 // pred_check_branch
        %225 = sbr.rel (%p223) target = $region20
      $region19: #{tpu_custom_call.1} parent=11 // pred_region
        _
      $region20: #{tpu_custom_call.1} parent=11 // pred_fallthru
        _
      // Predicated region
      $region21: #{tpu_custom_call.1} parent=11 // pred_check
        %p226 = pneg %p114
      $region22: #{tpu_custom_call.1} parent=11 // pred_check_branch
        %228 = sbr.rel (%p226) target = $region24
      $region23: #{tpu_custom_call.1} parent=11 // pred_region
        _
      $region24: #{tpu_custom_call.1} parent=11 // pred_fallthru
        _
      // Predicated region
      $region25: #{tpu_custom_call.1} parent=11 // pred_check
        %p229 = pneg %p135
      $region26: #{tpu_custom_call.1} parent=11 // pred_check_branch
        %231 = sbr.rel (%p229) target = $region28
      $region27: #{tpu_custom_call.1} parent=11 // pred_region
        _
      $region28: #{tpu_custom_call.1} parent=11 // pred_fallthru
        _
      // Predicated region
      $region29: #{tpu_custom_call.1} parent=11 // pred_check
        %p232 = pneg %p156
      $region30: #{tpu_custom_call.1} parent=11 // pred_check_branch
        %234 = sbr.rel (%p232) target = $region32
      $region31: #{tpu_custom_call.1} parent=11 // pred_region
        _
      $region32: #{tpu_custom_call.1} parent=11 // pred_fallthru
        _
      // Predicated region
      $region33: #{tpu_custom_call.1} parent=11 // pred_check
        %p235 = pneg %p177
      $region34: #{tpu_custom_call.1} parent=11 // pred_check_branch
        %237 = sbr.rel (%p235) target = $region36
      $region35: #{tpu_custom_call.1} parent=11 // pred_region
        _
      $region36: #{tpu_custom_call.1} parent=11 // pred_fallthru
        _
    $region12: #{tpu_custom_call.1} parent=5 // pred_fallthru
      _
    %p238 = scmp.lt.s32.totalorder %s13, 4
    // Predicated region
    $region37: #{tpu_custom_call.1} parent=5 // pred_check
      %p239 = pneg %p238
    $region38: #{tpu_custom_call.1} parent=5 // pred_check_branch
      %241 = sbr.rel (%p239) target = $region40
    $region39: #{tpu_custom_call.1} parent=5 // pred_region
      // Predicated region
      $region41: #{tpu_custom_call.1} parent=39 // pred_check
        %p242 = pneg %p45
      $region42: #{tpu_custom_call.1} parent=39 // pred_check_branch
        %244 = sbr.rel (%p242) target = $region44
      $region43: #{tpu_custom_call.1} parent=39 // pred_region
        %p245 = scmp.lt.s32.totalorder %s20, 1
        %s246 = scalar_select %p245, %s20, 1
        %s247 = smul.addr %s246, 54
        %s248 = smul.addr %s247, 8
        %s249 = scalar_lea.vmem %s0, %s248
      $region44: #{tpu_custom_call.1} parent=39 // pred_fallthru
        _
    $region40: #{tpu_custom_call.1} parent=5 // pred_fallthru
      _
    %p250 = scmp.le.s32.totalorder 1, %s13
    %p251 = scmp.lt.s32.totalorder %s13, 5
    %p252 = pnand %p250, %p251
    %p253 = pneg %p252
    // Predicated region
    $region45: #{tpu_custom_call.1} parent=5 // pred_check
      _
    $region46: #{tpu_custom_call.1} parent=5 // pred_check_branch
      %255 = sbr.rel (%p252) target = $region48
    $region47: #{tpu_custom_call.1} parent=5 // pred_region
      %s256 = ssub.s32 %s13, 1
      %p257 = scmp.lt.s32.totalorder %s22, 1
      %s258 = scalar_select %p257, %s22, 1
      %s259 = smul.addr %s258, 54
      %s260 = smul.addr %s259, 8
      %s261 = scalar_lea.vmem %s0, %s260
      %p262 = pneg %p51
      %p263 = pneg %p48
      %p264 = pneg %p72
      %p265 = pneg %p69
      %p266 = pneg %p93
      %p267 = pneg %p90
      %p268 = pneg %p114
      %p269 = pneg %p111
      %p270 = pneg %p135
      %p271 = pneg %p132
      %p272 = pneg %p156
      %p273 = pneg %p153
      %p274 = pneg %p177
      %p275 = pneg %p174
      %p276 = pneg %p205
      %p277 = pneg %p202
      %s278 = smul.u32 8, %s23
      %p279 = scmp.lt.s32.totalorder %s22, 1
      %s280 = scalar_select %p279, %s22, 1
      %p281 = scmp.lt.s32.totalorder %s278, 15
      %s282 = scalar_select %p281, %s278, 15
      %s283 = smul.addr %s282, 3
      %s284 = smul.addr %s280, 48
      %s285 = sadd.s32 %s283, %s284
      %s286 = smul.addr %s285, 8
      %s287 = scalar_lea.vmem %s7, %s286
      %p288 = scmp.lt.s32.totalorder %s22, 1
      %s289 = scalar_select %p288, %s22, 1
      %s290 = smul.addr %s289, 54
      %s291 = smul.addr %s290, 8
      %s292 = scalar_lea.vmem %s0, %s291
      %s293 = smul.u32 8, %s23
      %p294 = scmp.lt.s32.totalorder %s22, 1
      %s295 = scalar_select %p294, %s22, 1
      %p296 = scmp.lt.s32.totalorder %s293, 15
      %s297 = scalar_select %p296, %s293, 15
      %s298 = smul.addr %s297, 3
      %s299 = smul.addr %s295, 48
      %s300 = sadd.s32 %s298, %s299
      %s301 = smul.addr %s300, 8
      %s302 = scalar_lea.vmem %s7, %s301
      %s303 = smul.u32 8, %s23
      %s304 = smul.u32 %s23, 8
      %s305 = smul.u32 %s304, 24
      %s306 = scalar_lea.vmem %s292, %s305
      %v307 = vld [vmem:[%s306] sm:$0xff]
      %v308 = vld [vmem:[%s306 + $0x8] sm:$0xff]
      %v309 = vld [vmem:[%s306 + $0x10] sm:$0xff]
      %v310 = vld [vmem:[%s306 + $0x18] sm:$0xff]
      %v311 = vld [vmem:[%s306 + $0x20] sm:$0xff]
      %v312 = vld [vmem:[%s306 + $0x28] sm:$0xff]
      %v313 = vld [vmem:[%s306 + $0x30] sm:$0xff]
      %v314 = vld [vmem:[%s306 + $0x38] sm:$0xff]
      %v315 = vld [vmem:[%s306 + $0x40] sm:$0xff]
      %v316 = vld [vmem:[%s306 + $0x48] sm:$0xff]
      %v317 = vld [vmem:[%s306 + $0x50] sm:$0xff]
      %v318 = vld [vmem:[%s306 + $0x58] sm:$0xff]
      %v319 = vld [vmem:[%s306 + $0x60] sm:$0xff]
      %v320 = vld [vmem:[%s306 + $0x68] sm:$0xff]
      %v321 = vld [vmem:[%s306 + $0x70] sm:$0xff]
      %v322 = vld [vmem:[%s306 + $0x78] sm:$0xff]
      %v323 = vld [vmem:[%s306 + $0x80] sm:$0xff]
      %v324 = vld [vmem:[%s306 + $0x88] sm:$0xff]
      %v325 = vld [vmem:[%s306 + $0x90] sm:$0xff]
      %v326 = vld [vmem:[%s306 + $0x98] sm:$0xff]
      %v327 = vld [vmem:[%s306 + $0xa0] sm:$0xff]
      %v328 = vld [vmem:[%s306 + $0xa8] sm:$0xff]
      %v329 = vld [vmem:[%s306 + $0xb0] sm:$0xff]
      %v330 = vld [vmem:[%s306 + $0xb8] sm:$0xff]
      %v331 = vld [vmem:[%s306 + $0xc0] sm:$0xff]
      %v332 = vld [vmem:[%s306 + $0xc8] sm:$0xff]
      %v333 = vld [vmem:[%s306 + $0xd0] sm:$0xff]
      %v334 = vld [vmem:[%s306 + $0xd8] sm:$0xff]
      %v335 = vld [vmem:[%s306 + $0xe0] sm:$0xff]
      %v336 = vld [vmem:[%s306 + $0xe8] sm:$0xff]
      %v337 = vld [vmem:[%s1] sm:$0xff]
      %vm338 = vcmask 64512
      %v340 = vsel %vm338, %v307, 0
      %v343 = vsel %vm338, %v308, 0
      %v346 = vsel %vm338, %v309, 0
      %v349 = vsel %vm338, %v310, 0
      %v352 = vsel %vm338, %v311, 0
      %v355 = vsel %vm338, %v312, 0
      %v358 = vsel %vm338, %v313, 0
      %v361 = vsel %vm338, %v314, 0
      %v364 = vsel %vm338, %v315, 0
      %v367 = vsel %vm338, %v316, 0
      %v370 = vsel %vm338, %v317, 0
      %v373 = vsel %vm338, %v318, 0
      %v376 = vsel %vm338, %v319, 0
      %v379 = vsel %vm338, %v320, 0
      %v382 = vsel %vm338, %v321, 0
      %v385 = vsel %vm338, %v322, 0
      %v388 = vsel %vm338, %v323, 0
      %v391 = vsel %vm338, %v324, 0
      %v394 = vsel %vm338, %v325, 0
      %v397 = vsel %vm338, %v326, 0
      %v400 = vsel %vm338, %v327, 0
      %v403 = vsel %vm338, %v328, 0
      %v406 = vsel %vm338, %v329, 0
      %v409 = vsel %vm338, %v330, 0
      %v412 = vsel %vm338, %v331, 0
      %v415 = vsel %vm338, %v332, 0
      %v418 = vsel %vm338, %v333, 0
      %v421 = vsel %vm338, %v334, 0
      %v424 = vsel %vm338, %v335, 0
      %v427 = vsel %vm338, %v336, 0
      %429 = vmatprep.subr.mxu0 0.0
      %430 = vmatpush1.msra.mxu0 0.0
      %431 = vmatprep.subr.mxu0 0.0
      %432 = vmatpush1.msra.mxu0 0.0
      %433 = vmatprep.subr.mxu0 0.0
      %434 = vmatpush1.msra.mxu0 0.0
      %435 = vmatprep.subr.mxu0 0.0
      %436 = vmatpush1.msra.mxu0 0.0
      %437 = vmatprep.subr.mxu0 0.0
      %438 = vmatpush1.msra.mxu0 0.0
      %439 = vmatprep.subr.mxu0 0.0
      %440 = vmatpush1.msra.mxu0 0.0
      %441 = vmatprep.subr.mxu0 0.0
      %442 = vmatpush1.msra.mxu0 0.0
      %443 = vmatprep.subr.mxu0 0.0
      %444 = vmatpush1.msra.mxu0 0.0
      %445 = vmatprep.subr.mxu0 0.0
      %446 = vmatpush1.msra.mxu0 0.0
      %447 = vmatprep.subr.mxu0 0.0
      %448 = vmatpush1.msra.mxu0 0.0
      %449 = vmatprep.subr.mxu0 0.0
      %450 = vmatpush1.msra.mxu0 0.0
      %451 = vmatprep.subr.mxu0 0.0
      %452 = vmatpush1.msra.mxu0 0.0
      %453 = vmatprep.subr.mxu0 0.0
      %454 = vmatpush1.msra.mxu0 0.0
      %455 = vmatprep.subr.mxu0 0.0
      %456 = vmatpush1.msra.mxu0 0.0
      %457 = vmatprep.subr.mxu0 0.0
      %458 = vmatpush1.msra.mxu0 0.0
      %459 = vmatprep.subr.mxu0 0.0
      %460 = vmatpush1.msra.mxu0 %v337
      %461 = vmatprep.subr.mxu0 0.0
      %462 = vmatpush2.msra.mxu0 0.0
      %463 = vmatprep.subr.mxu0 0.0
      %464 = vmatpush2.msra.mxu0 0.0
      %465 = vmatprep.subr.mxu0 0.0
      %466 = vmatpush2.msra.mxu0 0.0
      %467 = vmatprep.subr.mxu0 0.0
      %468 = vmatpush2.msra.mxu0 0.0
      %469 = vmatprep.subr.mxu0 0.0
      %470 = vmatpush2.msra.mxu0 0.0
      %471 = vmatprep.subr.mxu0 0.0
      %472 = vmatpush2.msra.mxu0 0.0
      %473 = vmatprep.subr.mxu0 0.0
      %474 = vmatpush2.msra.mxu0 0.0
      %475 = vmatprep.subr.mxu0 0.0
      %476 = vmatpush2.msra.mxu0 0.0
      %477 = vmatprep.subr.mxu0 0.0
      %478 = vmatpush2.msra.mxu0 0.0
      %479 = vmatprep.subr.mxu0 0.0
      %480 = vmatpush2.msra.mxu0 0.0
      %481 = vmatprep.subr.mxu0 0.0
      %482 = vmatpush2.msra.mxu0 0.0
      %483 = vmatprep.subr.mxu0 0.0
      %484 = vmatpush2.msra.mxu0 0.0
      %485 = vmatprep.subr.mxu0 0.0
      %486 = vmatpush2.msra.mxu0 0.0
      %487 = vmatprep.subr.mxu0 0.0
      %488 = vmatpush2.msra.mxu0 0.0
      %489 = vmatprep.subr.mxu0 0.0
      %490 = vmatpush2.msra.mxu0 0.0
      %491 = vmatprep.subr.mxu0 0.0
      %492 = vmatpush2.msra.mxu0 0.0
      %493 = vmatprep.mubr.f32.mxu0 0.0
      %494 = vmatmul.mubr.f32.gmra.mxu0 %v340
      %v495 = vpop.f32.mrf.mxu0
      %v496 = vadd.f32 0.0, %v495
      %v497 = vpop.f32.mrf.mxu0
      %498 = vmatprep.mubr.f32.mxu0 0.0
      %499 = vmatmul.mubr.f32.gmra.mxu0 %v343
      %v500 = vpop.f32.mrf.mxu0
      %v501 = vadd.f32 0.0, %v500
      %v502 = vpop.f32.mrf.mxu0
      %503 = vmatprep.mubr.f32.mxu0 0.0
      %504 = vmatmul.mubr.f32.gmra.mxu0 %v346
      %v505 = vpop.f32.mrf.mxu0
      %v506 = vadd.f32 0.0, %v505
      %v507 = vpop.f32.mrf.mxu0
      %508 = vmatprep.mubr.f32.mxu0 0.0
      %509 = vmatmul.mubr.f32.gmra.mxu0 %v349
      %v510 = vpop.f32.mrf.mxu0
      %v511 = vadd.f32 0.0, %v510
      %v512 = vpop.f32.mrf.mxu0
      %513 = vmatprep.mubr.f32.mxu0 0.0
      %514 = vmatmul.mubr.f32.gmra.mxu0 %v352
      %v515 = vpop.f32.mrf.mxu0
      %v516 = vadd.f32 0.0, %v515
      %v517 = vpop.f32.mrf.mxu0
      %518 = vmatprep.mubr.f32.mxu0 0.0
      %519 = vmatmul.mubr.f32.gmra.mxu0 %v355
      %v520 = vpop.f32.mrf.mxu0
      %v521 = vadd.f32 0.0, %v520
      %v522 = vpop.f32.mrf.mxu0
      %523 = vmatprep.mubr.f32.mxu0 0.0
      %524 = vmatmul.mubr.f32.gmra.mxu0 %v358
      %v525 = vpop.f32.mrf.mxu0
      %v526 = vadd.f32 0.0, %v525
      %v527 = vpop.f32.mrf.mxu0
      %528 = vmatprep.mubr.f32.mxu0 0.0
      %529 = vmatmul.mubr.f32.gmra.mxu0 %v361
      %v530 = vpop.f32.mrf.mxu0
      %v531 = vadd.f32 0.0, %v530
      %v532 = vpop.f32.mrf.mxu0
      %533 = vmatprep.mubr.f32.mxu0 0.0
      %534 = vmatmul.mubr.f32.gmra.mxu0 %v364
      %v535 = vpop.f32.mrf.mxu0
      %v536 = vadd.f32 0.0, %v535
      %v537 = vpop.f32.mrf.mxu0
      %538 = vmatprep.mubr.f32.mxu0 0.0
      %539 = vmatmul.mubr.f32.gmra.mxu0 %v367
      %v540 = vpop.f32.mrf.mxu0
      %v541 = vadd.f32 0.0, %v540
      %v542 = vpop.f32.mrf.mxu0
      %543 = vmatprep.mubr.f32.mxu0 0.0
      %544 = vmatmul.mubr.f32.gmra.mxu0 %v370
      %v545 = vpop.f32.mrf.mxu0
      %v546 = vadd.f32 0.0, %v545
      %v547 = vpop.f32.mrf.mxu0
      %548 = vmatprep.mubr.f32.mxu0 0.0
      %549 = vmatmul.mubr.f32.gmra.mxu0 %v373
      %v550 = vpop.f32.mrf.mxu0
      %v551 = vadd.f32 0.0, %v550
      %v552 = vpop.f32.mrf.mxu0
      %553 = vmatprep.mubr.f32.mxu0 0.0
      %554 = vmatmul.mubr.f32.gmra.mxu0 %v376
      %v555 = vpop.f32.mrf.mxu0
      %v556 = vadd.f32 0.0, %v555
      %v557 = vpop.f32.mrf.mxu0
      %558 = vmatprep.mubr.f32.mxu0 0.0
      %559 = vmatmul.mubr.f32.gmra.mxu0 %v379
      %v560 = vpop.f32.mrf.mxu0
      %v561 = vadd.f32 0.0, %v560
      %v562 = vpop.f32.mrf.mxu0
      %563 = vmatprep.mubr.f32.mxu0 0.0
      %564 = vmatmul.mubr.f32.gmra.mxu0 %v382
      %v565 = vpop.f32.mrf.mxu0
      %v566 = vadd.f32 0.0, %v565
      %v567 = vpop.f32.mrf.mxu0
      %568 = vmatprep.mubr.f32.mxu0 0.0
      %569 = vmatmul.mubr.f32.gmra.mxu0 %v385
      %v570 = vpop.f32.mrf.mxu0
      %v571 = vadd.f32 0.0, %v570
      %v572 = vpop.f32.mrf.mxu0
      %573 = vmatprep.mubr.f32.mxu0 0.0
      %574 = vmatmul.mubr.f32.gmra.mxu0 %v388
      %v575 = vpop.f32.mrf.mxu0
      %v576 = vadd.f32 0.0, %v575
      %v577 = vpop.f32.mrf.mxu0
      %578 = vmatprep.mubr.f32.mxu0 0.0
      %579 = vmatmul.mubr.f32.gmra.mxu0 %v391
      %v580 = vpop.f32.mrf.mxu0
      %v581 = vadd.f32 0.0, %v580
      %v582 = vpop.f32.mrf.mxu0
      %583 = vmatprep.mubr.f32.mxu0 0.0
      %584 = vmatmul.mubr.f32.gmra.mxu0 %v394
      %v585 = vpop.f32.mrf.mxu0
      %v586 = vadd.f32 0.0, %v585
      %v587 = vpop.f32.mrf.mxu0
      %588 = vmatprep.mubr.f32.mxu0 0.0
      %589 = vmatmul.mubr.f32.gmra.mxu0 %v397
      %v590 = vpop.f32.mrf.mxu0
      %v591 = vadd.f32 0.0, %v590
      %v592 = vpop.f32.mrf.mxu0
      %593 = vmatprep.mubr.f32.mxu0 0.0
      %594 = vmatmul.mubr.f32.gmra.mxu0 %v400
      %v595 = vpop.f32.mrf.mxu0
      %v596 = vadd.f32 0.0, %v595
      %v597 = vpop.f32.mrf.mxu0
      %598 = vmatprep.mubr.f32.mxu0 0.0
      %599 = vmatmul.mubr.f32.gmra.mxu0 %v403
      %v600 = vpop.f32.mrf.mxu0
      %v601 = vadd.f32 0.0, %v600
      %v602 = vpop.f32.mrf.mxu0
      %603 = vmatprep.mubr.f32.mxu0 0.0
      %604 = vmatmul.mubr.f32.gmra.mxu0 %v406
      %v605 = vpop.f32.mrf.mxu0
      %v606 = vadd.f32 0.0, %v605
      %v607 = vpop.f32.mrf.mxu0
      %608 = vmatprep.mubr.f32.mxu0 0.0
      %609 = vmatmul.mubr.f32.gmra.mxu0 %v409
      %v610 = vpop.f32.mrf.mxu0
      %v611 = vadd.f32 0.0, %v610
      %v612 = vpop.f32.mrf.mxu0
      %613 = vmatprep.mubr.f32.mxu0 0.0
      %614 = vmatmul.mubr.f32.gmra.mxu0 %v412
      %v615 = vpop.f32.mrf.mxu0
      %v616 = vadd.f32 0.0, %v615
      %v617 = vpop.f32.mrf.mxu0
      %618 = vmatprep.mubr.f32.mxu0 0.0
      %619 = vmatmul.mubr.f32.gmra.mxu0 %v415
      %v620 = vpop.f32.mrf.mxu0
      %v621 = vadd.f32 0.0, %v620
      %v622 = vpop.f32.mrf.mxu0
      %623 = vmatprep.mubr.f32.mxu0 0.0
      %624 = vmatmul.mubr.f32.gmra.mxu0 %v418
      %v625 = vpop.f32.mrf.mxu0
      %v626 = vadd.f32 0.0, %v625
      %v627 = vpop.f32.mrf.mxu0
      %628 = vmatprep.mubr.f32.mxu0 0.0
      %629 = vmatmul.mubr.f32.gmra.mxu0 %v421
      %v630 = vpop.f32.mrf.mxu0
      %v631 = vadd.f32 0.0, %v630
      %v632 = vpop.f32.mrf.mxu0
      %633 = vmatprep.mubr.f32.mxu0 0.0
      %634 = vmatmul.mubr.f32.gmra.mxu0 %v424
      %v635 = vpop.f32.mrf.mxu0
      %v636 = vadd.f32 0.0, %v635
      %v637 = vpop.f32.mrf.mxu0
      %638 = vmatprep.mubr.f32.mxu0 0.0
      %639 = vmatmul.mubr.f32.gmra.mxu0 %v427
      %v640 = vpop.f32.mrf.mxu0
      %v641 = vadd.f32 0.0, %v640
      %v642 = vpop.f32.mrf.mxu0
      %643 = vdwg.mxu0
      %v644 = vld [vmem:[%s2] sm:$0x1]
      %v646 = vlaneseq
      %v647 = vshrl.u32 %v646, 7
      %v648 = vsub.s32 0, %v647
      %v649 = vrot.slane %v644, %v648
      %v651 = vadd.f32 %v496, %v649
      %v652 = vadd.f32 %v501, %v649
      %v653 = vadd.f32 %v506, %v649
      %v654 = vadd.f32 %v511, %v649
      %v655 = vadd.f32 %v516, %v649
      %v656 = vadd.f32 %v521, %v649
      %v657 = vadd.f32 %v526, %v649
      %v658 = vadd.f32 %v531, %v649
      %v659 = vadd.f32 %v536, %v649
      %v660 = vadd.f32 %v541, %v649
      %v661 = vadd.f32 %v546, %v649
      %v662 = vadd.f32 %v551, %v649
      %v663 = vadd.f32 %v556, %v649
      %v664 = vadd.f32 %v561, %v649
      %v665 = vadd.f32 %v566, %v649
      %v666 = vadd.f32 %v571, %v649
      %v667 = vadd.f32 %v576, %v649
      %v668 = vadd.f32 %v581, %v649
      %v669 = vadd.f32 %v586, %v649
      %v670 = vadd.f32 %v591, %v649
      %v671 = vadd.f32 %v596, %v649
      %v672 = vadd.f32 %v601, %v649
      %v673 = vadd.f32 %v606, %v649
      %v674 = vadd.f32 %v611, %v649
      %v675 = vadd.f32 %v616, %v649
      %v676 = vadd.f32 %v621, %v649
      %v677 = vadd.f32 %v626, %v649
      %v678 = vadd.f32 %v631, %v649
      %v679 = vadd.f32 %v636, %v649
      %v680 = vadd.f32 %v641, %v649
      %v681 = vstv %s304
      %v682 = vadd.s32 %v681, 1
      %v683 = vadd.s32 %v681, 2
      %v684 = vadd.s32 %v681, 3
      %v685 = vadd.s32 %v681, 4
      %v686 = vadd.s32 %v681, 5
      %v687 = vadd.s32 %v681, 6
      %v688 = vadd.s32 %v681, 7
      %v689 = vadd.s32 %v681, 8
      %v690 = vadd.s32 %v681, 9
      %v691 = vlaneseq
      %v692 = vshrl.u32 %v691, 7
      %v693 = vadd.s32 %v692, 8
      %v694 = vadd.s32 %v692, 16
      %vm695 = vcmp.ge.s32.totalorder %v681, 1
      %vm696 = vcmp.ge.s32.totalorder %v682, 1
      %vm697 = vcmp.ge.s32.totalorder %v683, 1
      %vm698 = vcmp.ge.s32.totalorder %v684, 1
      %vm699 = vcmp.ge.s32.totalorder %v685, 1
      %vm700 = vcmp.ge.s32.totalorder %v686, 1
      %vm701 = vcmp.ge.s32.totalorder %v687, 1
      %vm702 = vcmp.ge.s32.totalorder %v688, 1
      %vm703 = vcmp.ge.s32.totalorder %v689, 1
      %vm704 = vcmp.ge.s32.totalorder %v690, 1
      %vm705 = vcmp.le.s32.totalorder %v681, 16
      %vm706 = vcmp.le.s32.totalorder %v682, 16
      %vm707 = vcmp.le.s32.totalorder %v683, 16
      %vm708 = vcmp.le.s32.totalorder %v684, 16
      %vm709 = vcmp.le.s32.totalorder %v685, 16
      %vm710 = vcmp.le.s32.totalorder %v686, 16
      %vm711 = vcmp.le.s32.totalorder %v687, 16
      %vm712 = vcmp.le.s32.totalorder %v688, 16
      %vm713 = vcmp.le.s32.totalorder %v689, 16
      %vm714 = vcmp.le.s32.totalorder %v690, 16
      %vm715 = vmand %vm695, %vm705
      %vm716 = vmand %vm696, %vm706
      %vm717 = vmand %vm697, %vm707
      %vm718 = vmand %vm698, %vm708
      %vm719 = vmand %vm699, %vm709
      %vm720 = vmand %vm700, %vm710
      %vm721 = vmand %vm701, %vm711
      %vm722 = vmand %vm702, %vm712
      %vm723 = vmand %vm703, %vm713
      %vm724 = vmand %vm704, %vm714
      %v725 = vsel %vm715, 1, 0
      %v726 = vsel %vm716, 1, 0
      %v727 = vsel %vm717, 1, 0
      %v728 = vsel %vm718, 1, 0
      %v729 = vsel %vm719, 1, 0
      %v730 = vsel %vm720, 1, 0
      %v731 = vsel %vm721, 1, 0
      %v732 = vsel %vm722, 1, 0
      %v733 = vsel %vm723, 1, 0
      %v734 = vsel %vm724, 1, 0
      %v735 = vcvt.s32.f32 %v725
      %v736 = vcvt.s32.f32 %v726
      %v737 = vcvt.s32.f32 %v727
      %v738 = vcvt.s32.f32 %v728
      %v739 = vcvt.s32.f32 %v729
      %v740 = vcvt.s32.f32 %v730
      %v741 = vcvt.s32.f32 %v731
      %v742 = vcvt.s32.f32 %v732
      %v743 = vcvt.s32.f32 %v733
      %v744 = vcvt.s32.f32 %v734
      %vm745 = vcmp.ge.s32.totalorder %v692, 1
      %vm746 = vcmp.ge.s32.totalorder %v693, 1
      %vm747 = vcmp.ge.s32.totalorder %v694, 1
      %vm748 = vcmp.le.s32.totalorder %v692, 16
      %vm749 = vcmp.le.s32.totalorder %v693, 16
      %vm750 = vcmp.le.s32.totalorder %v694, 16
      %vm751 = vmand %vm745, %vm748
      %vm752 = vmand %vm746, %vm749
      %vm753 = vmand %vm747, %vm750
      %v754 = vsel %vm751, 1, 0
      %v755 = vsel %vm752, 1, 0
      %v756 = vsel %vm753, 1, 0
      %v757 = vcvt.s32.f32 %v754
      %v758 = vcvt.s32.f32 %v755
      %v759 = vcvt.s32.f32 %v756
      %v760 = vmul.f32 %v735, %v757
      %v761 = vmul.f32 %v735, %v758
      %v762 = vmul.f32 %v735, %v759
      %v763 = vmul.f32 %v736, %v757
      %v764 = vmul.f32 %v736, %v758
      %v765 = vmul.f32 %v736, %v759
      %v766 = vmul.f32 %v737, %v757
      %v767 = vmul.f32 %v737, %v758
      %v768 = vmul.f32 %v737, %v759
      %v769 = vmul.f32 %v738, %v757
      %v770 = vmul.f32 %v738, %v758
      %v771 = vmul.f32 %v738, %v759
      %v772 = vmul.f32 %v739, %v757
      %v773 = vmul.f32 %v739, %v758
      %v774 = vmul.f32 %v739, %v759
      %v775 = vmul.f32 %v740, %v757
      %v776 = vmul.f32 %v740, %v758
      %v777 = vmul.f32 %v740, %v759
      %v778 = vmul.f32 %v741, %v757
      %v779 = vmul.f32 %v741, %v758
      %v780 = vmul.f32 %v741, %v759
      %v781 = vmul.f32 %v742, %v757
      %v782 = vmul.f32 %v742, %v758
      %v783 = vmul.f32 %v742, %v759
      %v784 = vmul.f32 %v743, %v757
      %v785 = vmul.f32 %v743, %v758
      %v786 = vmul.f32 %v743, %v759
      %v787 = vmul.f32 %v744, %v757
      %v788 = vmul.f32 %v744, %v758
      %v789 = vmul.f32 %v744, %v759
      %v790 = vmax.f32 %v651, 0.0
      %v791 = vmax.f32 %v652, 0.0
      %v792 = vmax.f32 %v653, 0.0
      %v793 = vmax.f32 %v654, 0.0
      %v794 = vmax.f32 %v655, 0.0
      %v795 = vmax.f32 %v656, 0.0
      %v796 = vmax.f32 %v657, 0.0
      %v797 = vmax.f32 %v658, 0.0
      %v798 = vmax.f32 %v659, 0.0
      %v799 = vmax.f32 %v660, 0.0
      %v800 = vmax.f32 %v661, 0.0
      %v801 = vmax.f32 %v662, 0.0
      %v802 = vmax.f32 %v663, 0.0
      %v803 = vmax.f32 %v664, 0.0
      %v804 = vmax.f32 %v665, 0.0
      %v805 = vmax.f32 %v666, 0.0
      %v806 = vmax.f32 %v667, 0.0
      %v807 = vmax.f32 %v668, 0.0
      %v808 = vmax.f32 %v669, 0.0
      %v809 = vmax.f32 %v670, 0.0
      %v810 = vmax.f32 %v671, 0.0
      %v811 = vmax.f32 %v672, 0.0
      %v812 = vmax.f32 %v673, 0.0
      %v813 = vmax.f32 %v674, 0.0
      %v814 = vmax.f32 %v675, 0.0
      %v815 = vmax.f32 %v676, 0.0
      %v816 = vmax.f32 %v677, 0.0
      %v817 = vmax.f32 %v678, 0.0
      %v818 = vmax.f32 %v679, 0.0
      %v819 = vmax.f32 %v680, 0.0
      %v820 = vmul.f32 %v760, 6.0
      %v821 = vmul.f32 %v761, 6.0
      %v822 = vmul.f32 %v762, 6.0
      %v823 = vmul.f32 %v763, 6.0
      %v824 = vmul.f32 %v764, 6.0
      %v825 = vmul.f32 %v765, 6.0
      %v826 = vmul.f32 %v766, 6.0
      %v827 = vmul.f32 %v767, 6.0
      %v828 = vmul.f32 %v768, 6.0
      %v829 = vmul.f32 %v769, 6.0
      %v830 = vmul.f32 %v770, 6.0
      %v831 = vmul.f32 %v771, 6.0
      %v832 = vmul.f32 %v772, 6.0
      %v833 = vmul.f32 %v773, 6.0
      %v834 = vmul.f32 %v774, 6.0
      %v835 = vmul.f32 %v775, 6.0
      %v836 = vmul.f32 %v776, 6.0
      %v837 = vmul.f32 %v777, 6.0
      %v838 = vmul.f32 %v778, 6.0
      %v839 = vmul.f32 %v779, 6.0
      %v840 = vmul.f32 %v780, 6.0
      %v841 = vmul.f32 %v781, 6.0
      %v842 = vmul.f32 %v782, 6.0
      %v843 = vmul.f32 %v783, 6.0
      %v844 = vmul.f32 %v784, 6.0
      %v845 = vmul.f32 %v785, 6.0
      %v846 = vmul.f32 %v786, 6.0
      %v847 = vmul.f32 %v787, 6.0
      %v848 = vmul.f32 %v788, 6.0
      %v849 = vmul.f32 %v789, 6.0
      %v850 = vmin.f32 %v790, %v820
      %v851 = vmin.f32 %v791, %v821
      %v852 = vmin.f32 %v792, %v822
      %v853 = vmin.f32 %v793, %v823
      %v854 = vmin.f32 %v794, %v824
      %v855 = vmin.f32 %v795, %v825
      %v856 = vmin.f32 %v796, %v826
      %v857 = vmin.f32 %v797, %v827
      %v858 = vmin.f32 %v798, %v828
      %v859 = vmin.f32 %v799, %v829
      %v860 = vmin.f32 %v800, %v830
      %v861 = vmin.f32 %v801, %v831
      %v862 = vmin.f32 %v802, %v832
      %v863 = vmin.f32 %v803, %v833
      %v864 = vmin.f32 %v804, %v834
      %v865 = vmin.f32 %v805, %v835
      %v866 = vmin.f32 %v806, %v836
      %v867 = vmin.f32 %v807, %v837
      %v868 = vmin.f32 %v808, %v838
      %v869 = vmin.f32 %v809, %v839
      %v870 = vmin.f32 %v810, %v840
      %v871 = vmin.f32 %v811, %v841
      %v872 = vmin.f32 %v812, %v842
      %v873 = vmin.f32 %v813, %v843
      %v874 = vmin.f32 %v814, %v844
      %v875 = vmin.f32 %v815, %v845
      %v876 = vmin.f32 %v816, %v846
      %v877 = vmin.f32 %v817, %v847
      %v878 = vmin.f32 %v818, %v848
      %v879 = vmin.f32 %v819, %v849
      %v880 = vld [vmem:[%s3] sm:$0xff]
      %v881 = vld [vmem:[%s3 + $0x8] sm:$0x1]
      %v882 = vld [vmem:[%s4] sm:$0x1]
      %v883 = vrot.slane %v850, 7
      %v884 = vrot.slane %v853, 7
      %v885 = vrot.slane %v856, 7
      %v886 = vrot.slane %v859, 7
      %v887 = vrot.slane %v862, 7
      %v888 = vrot.slane %v865, 7
      %v889 = vrot.slane %v868, 7
      %v890 = vrot.slane %v871, 7
      %v891 = vrot.slane %v851, 7
      %v892 = vrot.slane %v854, 7
      %v893 = vrot.slane %v857, 7
      %v894 = vrot.slane %v860, 7
      %v895 = vrot.slane %v863, 7
      %v896 = vrot.slane %v866, 7
      %v897 = vrot.slane %v869, 7
      %v898 = vrot.slane %v872, 7
      %v899 = vrot.slane %v852, 7
      %v900 = vrot.slane %v855, 7
      %v901 = vrot.slane %v858, 7
      %v902 = vrot.slane %v861, 7
      %v903 = vrot.slane %v864, 7
      %v904 = vrot.slane %v867, 7
      %v905 = vrot.slane %v870, 7
      %v906 = vrot.slane %v873, 7
      %vm907 = vcmp.lt.s32.totalorder %v692, 1
      %v908 = vsel %vm907, %v891, %v899
      %v909 = vsel %vm907, %v892, %v900
      %v910 = vsel %vm907, %v893, %v901
      %v911 = vsel %vm907, %v894, %v902
      %v912 = vsel %vm907, %v895, %v903
      %v913 = vsel %vm907, %v896, %v904
      %v914 = vsel %vm907, %v897, %v905
      %v915 = vsel %vm907, %v898, %v906
      %v916 = vsel %vm907, %v883, %v891
      %v917 = vsel %vm907, %v884, %v892
      %v918 = vsel %vm907, %v885, %v893
      %v919 = vsel %vm907, %v886, %v894
      %v920 = vsel %vm907, %v887, %v895
      %v921 = vsel %vm907, %v888, %v896
      %v922 = vsel %vm907, %v889, %v897
      %v923 = vsel %vm907, %v890, %v898
      %v924 = vsel %vm907, %v899, %v883
      %v925 = vsel %vm907, %v900, %v884
      %v926 = vsel %vm907, %v901, %v885
      %v927 = vsel %vm907, %v902, %v886
      %v928 = vsel %vm907, %v903, %v887
      %v929 = vsel %vm907, %v904, %v888
      %v930 = vsel %vm907, %v905, %v889
      %v931 = vsel %vm907, %v906, %v890
      %v932 = vlaneseq
      %v933 = vshrl.u32 %v932, 7
      %v934 = vsub.s32 0, %v933
      %v935 = vrot.slane %v880, %v934
      %v936 = vmul.f32 %v924, %v935
      %v937 = vmul.f32 %v916, %v935
      %v938 = vmul.f32 %v908, %v935
      %v939 = vmul.f32 %v925, %v935
      %v940 = vmul.f32 %v917, %v935
      %v941 = vmul.f32 %v909, %v935
      %v942 = vmul.f32 %v926, %v935
      %v943 = vmul.f32 %v918, %v935
      %v944 = vmul.f32 %v910, %v935
      %v945 = vmul.f32 %v927, %v935
      %v946 = vmul.f32 %v919, %v935
      %v947 = vmul.f32 %v911, %v935
      %v948 = vmul.f32 %v928, %v935
      %v949 = vmul.f32 %v920, %v935
      %v950 = vmul.f32 %v912, %v935
      %v951 = vmul.f32 %v929, %v935
      %v952 = vmul.f32 %v921, %v935
      %v953 = vmul.f32 %v913, %v935
      %v954 = vmul.f32 %v930, %v935
      %v955 = vmul.f32 %v922, %v935
      %v956 = vmul.f32 %v914, %v935
      %v957 = vmul.f32 %v931, %v935
      %v958 = vmul.f32 %v923, %v935
      %v959 = vmul.f32 %v915, %v935
      %v961 = vlaneseq
      %v962 = vshrl.u32 %v961, 7
      %v963 = vsub.s32 0, %v962
      %v964 = vrot.slane %v882, %v963
      %v966 = vadd.f32 %v936, %v964
      %v967 = vadd.f32 %v937, %v964
      %v968 = vadd.f32 %v938, %v964
      %v969 = vadd.f32 %v939, %v964
      %v970 = vadd.f32 %v940, %v964
      %v971 = vadd.f32 %v941, %v964
      %v972 = vadd.f32 %v942, %v964
      %v973 = vadd.f32 %v943, %v964
      %v974 = vadd.f32 %v944, %v964
      %v975 = vadd.f32 %v945, %v964
      %v976 = vadd.f32 %v946, %v964
      %v977 = vadd.f32 %v947, %v964
      %v978 = vadd.f32 %v948, %v964
      %v979 = vadd.f32 %v949, %v964
      %v980 = vadd.f32 %v950, %v964
      %v981 = vadd.f32 %v951, %v964
      %v982 = vadd.f32 %v952, %v964
      %v983 = vadd.f32 %v953, %v964
      %v984 = vadd.f32 %v954, %v964
      %v985 = vadd.f32 %v955, %v964
      %v986 = vadd.f32 %v956, %v964
      %v987 = vadd.f32 %v957, %v964
      %v988 = vadd.f32 %v958, %v964
      %v989 = vadd.f32 %v959, %v964
      %v990 = vlaneseq
      %v991 = vshrl.u32 %v990, 7
      %v992 = vsub.s32 1, %v991
      %v993 = vrot.slane %v880, %v992
      %v994 = vmul.f32 %v850, %v993
      %v995 = vmul.f32 %v851, %v993
      %v996 = vmul.f32 %v852, %v993
      %v997 = vmul.f32 %v853, %v993
      %v998 = vmul.f32 %v854, %v993
      %v999 = vmul.f32 %v855, %v993
      %v1000 = vmul.f32 %v856, %v993
      %v1001 = vmul.f32 %v857, %v993
      %v1002 = vmul.f32 %v858, %v993
      %v1003 = vmul.f32 %v859, %v993
      %v1004 = vmul.f32 %v860, %v993
      %v1005 = vmul.f32 %v861, %v993
      %v1006 = vmul.f32 %v862, %v993
      %v1007 = vmul.f32 %v863, %v993
      %v1008 = vmul.f32 %v864, %v993
      %v1009 = vmul.f32 %v865, %v993
      %v1010 = vmul.f32 %v866, %v993
      %v1011 = vmul.f32 %v867, %v993
      %v1012 = vmul.f32 %v868, %v993
      %v1013 = vmul.f32 %v869, %v993
      %v1014 = vmul.f32 %v870, %v993
      %v1015 = vmul.f32 %v871, %v993
      %v1016 = vmul.f32 %v872, %v993
      %v1017 = vmul.f32 %v873, %v993
      %v1018 = vadd.f32 %v966, %v994
      %v1019 = vadd.f32 %v967, %v995
      %v1020 = vadd.f32 %v968, %v996
      %v1021 = vadd.f32 %v969, %v997
      %v1022 = vadd.f32 %v970, %v998
      %v1023 = vadd.f32 %v971, %v999
      %v1024 = vadd.f32 %v972, %v1000
      %v1025 = vadd.f32 %v973, %v1001
      %v1026 = vadd.f32 %v974, %v1002
      %v1027 = vadd.f32 %v975, %v1003
      %v1028 = vadd.f32 %v976, %v1004
      %v1029 = vadd.f32 %v977, %v1005
      %v1030 = vadd.f32 %v978, %v1006
      %v1031 = vadd.f32 %v979, %v1007
      %v1032 = vadd.f32 %v980, %v1008
      %v1033 = vadd.f32 %v981, %v1009
      %v1034 = vadd.f32 %v982, %v1010
      %v1035 = vadd.f32 %v983, %v1011
      %v1036 = vadd.f32 %v984, %v1012
      %v1037 = vadd.f32 %v985, %v1013
      %v1038 = vadd.f32 %v986, %v1014
      %v1039 = vadd.f32 %v987, %v1015
      %v1040 = vadd.f32 %v988, %v1016
      %v1041 = vadd.f32 %v989, %v1017
      %v1042 = vrot.slane %v850, 1
      %v1043 = vrot.slane %v853, 1
      %v1044 = vrot.slane %v856, 1
      %v1045 = vrot.slane %v859, 1
      %v1046 = vrot.slane %v862, 1
      %v1047 = vrot.slane %v865, 1
      %v1048 = vrot.slane %v868, 1
      %v1049 = vrot.slane %v871, 1
      %v1050 = vrot.slane %v851, 1
      %v1051 = vrot.slane %v854, 1
      %v1052 = vrot.slane %v857, 1
      %v1053 = vrot.slane %v860, 1
      %v1054 = vrot.slane %v863, 1
      %v1055 = vrot.slane %v866, 1
      %v1056 = vrot.slane %v869, 1
      %v1057 = vrot.slane %v872, 1
      %v1058 = vrot.slane %v852, 1
      %v1059 = vrot.slane %v855, 1
      %v1060 = vrot.slane %v858, 1
      %v1061 = vrot.slane %v861, 1
      %v1062 = vrot.slane %v864, 1
      %v1063 = vrot.slane %v867, 1
      %v1064 = vrot.slane %v870, 1
      %v1065 = vrot.slane %v873, 1
      %vm1066 = vcmp.lt.s32.totalorder %v692, 7
      %v1067 = vsel %vm1066, %v1050, %v1058
      %v1068 = vsel %vm1066, %v1051, %v1059
      %v1069 = vsel %vm1066, %v1052, %v1060
      %v1070 = vsel %vm1066, %v1053, %v1061
      %v1071 = vsel %vm1066, %v1054, %v1062
      %v1072 = vsel %vm1066, %v1055, %v1063
      %v1073 = vsel %vm1066, %v1056, %v1064
      %v1074 = vsel %vm1066, %v1057, %v1065
      %v1075 = vsel %vm1066, %v1042, %v1050
      %v1076 = vsel %vm1066, %v1043, %v1051
      %v1077 = vsel %vm1066, %v1044, %v1052
      %v1078 = vsel %vm1066, %v1045, %v1053
      %v1079 = vsel %vm1066, %v1046, %v1054
      %v1080 = vsel %vm1066, %v1047, %v1055
      %v1081 = vsel %vm1066, %v1048, %v1056
      %v1082 = vsel %vm1066, %v1049, %v1057
      %v1083 = vsel %vm1066, %v1058, %v1042
      %v1084 = vsel %vm1066, %v1059, %v1043
      %v1085 = vsel %vm1066, %v1060, %v1044
      %v1086 = vsel %vm1066, %v1061, %v1045
      %v1087 = vsel %vm1066, %v1062, %v1046
      %v1088 = vsel %vm1066, %v1063, %v1047
      %v1089 = vsel %vm1066, %v1064, %v1048
      %v1090 = vsel %vm1066, %v1065, %v1049
      %v1091 = vlaneseq
      %v1092 = vshrl.u32 %v1091, 7
      %v1093 = vsub.s32 2, %v1092
      %v1094 = vrot.slane %v880, %v1093
      %v1095 = vmul.f32 %v1075, %v1094
      %v1096 = vmul.f32 %v1067, %v1094
      %v1097 = vmul.f32 %v1083, %v1094
      %v1098 = vmul.f32 %v1076, %v1094
      %v1099 = vmul.f32 %v1068, %v1094
      %v1100 = vmul.f32 %v1084, %v1094
      %v1101 = vmul.f32 %v1077, %v1094
      %v1102 = vmul.f32 %v1069, %v1094
      %v1103 = vmul.f32 %v1085, %v1094
      %v1104 = vmul.f32 %v1078, %v1094
      %v1105 = vmul.f32 %v1070, %v1094
      %v1106 = vmul.f32 %v1086, %v1094
      %v1107 = vmul.f32 %v1079, %v1094
      %v1108 = vmul.f32 %v1071, %v1094
      %v1109 = vmul.f32 %v1087, %v1094
      %v1110 = vmul.f32 %v1080, %v1094
      %v1111 = vmul.f32 %v1072, %v1094
      %v1112 = vmul.f32 %v1088, %v1094
      %v1113 = vmul.f32 %v1081, %v1094
      %v1114 = vmul.f32 %v1073, %v1094
      %v1115 = vmul.f32 %v1089, %v1094
      %v1116 = vmul.f32 %v1082, %v1094
      %v1117 = vmul.f32 %v1074, %v1094
      %v1118 = vmul.f32 %v1090, %v1094
      %v1119 = vadd.f32 %v1018, %v1095
      %v1120 = vadd.f32 %v1019, %v1096
      %v1121 = vadd.f32 %v1020, %v1097
      %v1122 = vadd.f32 %v1021, %v1098
      %v1123 = vadd.f32 %v1022, %v1099
      %v1124 = vadd.f32 %v1023, %v1100
      %v1125 = vadd.f32 %v1024, %v1101
      %v1126 = vadd.f32 %v1025, %v1102
      %v1127 = vadd.f32 %v1026, %v1103
      %v1128 = vadd.f32 %v1027, %v1104
      %v1129 = vadd.f32 %v1028, %v1105
      %v1130 = vadd.f32 %v1029, %v1106
      %v1131 = vadd.f32 %v1030, %v1107
      %v1132 = vadd.f32 %v1031, %v1108
      %v1133 = vadd.f32 %v1032, %v1109
      %v1134 = vadd.f32 %v1033, %v1110
      %v1135 = vadd.f32 %v1034, %v1111
      %v1136 = vadd.f32 %v1035, %v1112
      %v1137 = vadd.f32 %v1036, %v1113
      %v1138 = vadd.f32 %v1037, %v1114
      %v1139 = vadd.f32 %v1038, %v1115
      %v1140 = vadd.f32 %v1039, %v1116
      %v1141 = vadd.f32 %v1040, %v1117
      %v1142 = vadd.f32 %v1041, %v1118
      %v1143 = vrot.slane %v874, 7
      %v1144 = vrot.slane %v875, 7
      %v1145 = vrot.slane %v876, 7
      %v1146 = vsel %vm907, %v1144, %v1145
      %v1147 = vsel %vm907, %v1143, %v1144
      %v1148 = vsel %vm907, %v1145, %v1143
      %v1149 = vlaneseq
      %v1150 = vshrl.u32 %v1149, 7
      %v1151 = vsub.s32 3, %v1150
      %v1152 = vrot.slane %v880, %v1151
      %v1153 = vmul.f32 %v925, %v1152
      %v1154 = vmul.f32 %v917, %v1152
      %v1155 = vmul.f32 %v909, %v1152
      %v1156 = vmul.f32 %v926, %v1152
      %v1157 = vmul.f32 %v918, %v1152
      %v1158 = vmul.f32 %v910, %v1152
      %v1159 = vmul.f32 %v927, %v1152
      %v1160 = vmul.f32 %v919, %v1152
      %v1161 = vmul.f32 %v911, %v1152
      %v1162 = vmul.f32 %v928, %v1152
      %v1163 = vmul.f32 %v920, %v1152
      %v1164 = vmul.f32 %v912, %v1152
      %v1165 = vmul.f32 %v929, %v1152
      %v1166 = vmul.f32 %v921, %v1152
      %v1167 = vmul.f32 %v913, %v1152
      %v1168 = vmul.f32 %v930, %v1152
      %v1169 = vmul.f32 %v922, %v1152
      %v1170 = vmul.f32 %v914, %v1152
      %v1171 = vmul.f32 %v931, %v1152
      %v1172 = vmul.f32 %v923, %v1152
      %v1173 = vmul.f32 %v915, %v1152
      %v1174 = vmul.f32 %v1148, %v1152
      %v1175 = vmul.f32 %v1147, %v1152
      %v1176 = vmul.f32 %v1146, %v1152
      %v1177 = vadd.f32 %v1119, %v1153
      %v1178 = vadd.f32 %v1120, %v1154
      %v1179 = vadd.f32 %v1121, %v1155
      %v1180 = vadd.f32 %v1122, %v1156
      %v1181 = vadd.f32 %v1123, %v1157
      %v1182 = vadd.f32 %v1124, %v1158
      %v1183 = vadd.f32 %v1125, %v1159
      %v1184 = vadd.f32 %v1126, %v1160
      %v1185 = vadd.f32 %v1127, %v1161
      %v1186 = vadd.f32 %v1128, %v1162
      %v1187 = vadd.f32 %v1129, %v1163
      %v1188 = vadd.f32 %v1130, %v1164
      %v1189 = vadd.f32 %v1131, %v1165
      %v1190 = vadd.f32 %v1132, %v1166
      %v1191 = vadd.f32 %v1133, %v1167
      %v1192 = vadd.f32 %v1134, %v1168
      %v1193 = vadd.f32 %v1135, %v1169
      %v1194 = vadd.f32 %v1136, %v1170
      %v1195 = vadd.f32 %v1137, %v1171
      %v1196 = vadd.f32 %v1138, %v1172
      %v1197 = vadd.f32 %v1139, %v1173
      %v1198 = vadd.f32 %v1140, %v1174
      %v1199 = vadd.f32 %v1141, %v1175
      %v1200 = vadd.f32 %v1142, %v1176
      %v1201 = vlaneseq
      %v1202 = vshrl.u32 %v1201, 7
      %v1203 = vsub.s32 4, %v1202
      %v1204 = vrot.slane %v880, %v1203
      %v1205 = vmul.f32 %v853, %v1204
      %v1206 = vmul.f32 %v854, %v1204
      %v1207 = vmul.f32 %v855, %v1204
      %v1208 = vmul.f32 %v856, %v1204
      %v1209 = vmul.f32 %v857, %v1204
      %v1210 = vmul.f32 %v858, %v1204
      %v1211 = vmul.f32 %v859, %v1204
      %v1212 = vmul.f32 %v860, %v1204
      %v1213 = vmul.f32 %v861, %v1204
      %v1214 = vmul.f32 %v862, %v1204
      %v1215 = vmul.f32 %v863, %v1204
      %v1216 = vmul.f32 %v864, %v1204
      %v1217 = vmul.f32 %v865, %v1204
      %v1218 = vmul.f32 %v866, %v1204
      %v1219 = vmul.f32 %v867, %v1204
      %v1220 = vmul.f32 %v868, %v1204
      %v1221 = vmul.f32 %v869, %v1204
      %v1222 = vmul.f32 %v870, %v1204
      %v1223 = vmul.f32 %v871, %v1204
      %v1224 = vmul.f32 %v872, %v1204
      %v1225 = vmul.f32 %v873, %v1204
      %v1226 = vmul.f32 %v874, %v1204
      %v1227 = vmul.f32 %v875, %v1204
      %v1228 = vmul.f32 %v876, %v1204
      %v1229 = vadd.f32 %v1177, %v1205
      %v1230 = vadd.f32 %v1178, %v1206
      %v1231 = vadd.f32 %v1179, %v1207
      %v1232 = vadd.f32 %v1180, %v1208
      %v1233 = vadd.f32 %v1181, %v1209
      %v1234 = vadd.f32 %v1182, %v1210
      %v1235 = vadd.f32 %v1183, %v1211
      %v1236 = vadd.f32 %v1184, %v1212
      %v1237 = vadd.f32 %v1185, %v1213
      %v1238 = vadd.f32 %v1186, %v1214
      %v1239 = vadd.f32 %v1187, %v1215
      %v1240 = vadd.f32 %v1188, %v1216
      %v1241 = vadd.f32 %v1189, %v1217
      %v1242 = vadd.f32 %v1190, %v1218
      %v1243 = vadd.f32 %v1191, %v1219
      %v1244 = vadd.f32 %v1192, %v1220
      %v1245 = vadd.f32 %v1193, %v1221
      %v1246 = vadd.f32 %v1194, %v1222
      %v1247 = vadd.f32 %v1195, %v1223
      %v1248 = vadd.f32 %v1196, %v1224
      %v1249 = vadd.f32 %v1197, %v1225
      %v1250 = vadd.f32 %v1198, %v1226
      %v1251 = vadd.f32 %v1199, %v1227
      %v1252 = vadd.f32 %v1200, %v1228
      %v1253 = vrot.slane %v874, 1
      %v1254 = vrot.slane %v875, 1
      %v1255 = vrot.slane %v876, 1
      %v1256 = vsel %vm1066, %v1254, %v1255
      %v1257 = vsel %vm1066, %v1253, %v1254
      %v1258 = vsel %vm1066, %v1255, %v1253
      %v1259 = vlaneseq
      %v1260 = vshrl.u32 %v1259, 7
      %v1261 = vsub.s32 5, %v1260
      %v1262 = vrot.slane %v880, %v1261
      %v1263 = vmul.f32 %v1076, %v1262
      %v1264 = vmul.f32 %v1068, %v1262
      %v1265 = vmul.f32 %v1084, %v1262
      %v1266 = vmul.f32 %v1077, %v1262
      %v1267 = vmul.f32 %v1069, %v1262
      %v1268 = vmul.f32 %v1085, %v1262
      %v1269 = vmul.f32 %v1078, %v1262
      %v1270 = vmul.f32 %v1070, %v1262
      %v1271 = vmul.f32 %v1086, %v1262
      %v1272 = vmul.f32 %v1079, %v1262
      %v1273 = vmul.f32 %v1071, %v1262
      %v1274 = vmul.f32 %v1087, %v1262
      %v1275 = vmul.f32 %v1080, %v1262
      %v1276 = vmul.f32 %v1072, %v1262
      %v1277 = vmul.f32 %v1088, %v1262
      %v1278 = vmul.f32 %v1081, %v1262
      %v1279 = vmul.f32 %v1073, %v1262
      %v1280 = vmul.f32 %v1089, %v1262
      %v1281 = vmul.f32 %v1082, %v1262
      %v1282 = vmul.f32 %v1074, %v1262
      %v1283 = vmul.f32 %v1090, %v1262
      %v1284 = vmul.f32 %v1257, %v1262
      %v1285 = vmul.f32 %v1256, %v1262
      %v1286 = vmul.f32 %v1258, %v1262
      %v1287 = vadd.f32 %v1229, %v1263
      %v1288 = vadd.f32 %v1230, %v1264
      %v1289 = vadd.f32 %v1231, %v1265
      %v1290 = vadd.f32 %v1232, %v1266
      %v1291 = vadd.f32 %v1233, %v1267
      %v1292 = vadd.f32 %v1234, %v1268
      %v1293 = vadd.f32 %v1235, %v1269
      %v1294 = vadd.f32 %v1236, %v1270
      %v1295 = vadd.f32 %v1237, %v1271
      %v1296 = vadd.f32 %v1238, %v1272
      %v1297 = vadd.f32 %v1239, %v1273
      %v1298 = vadd.f32 %v1240, %v1274
      %v1299 = vadd.f32 %v1241, %v1275
      %v1300 = vadd.f32 %v1242, %v1276
      %v1301 = vadd.f32 %v1243, %v1277
      %v1302 = vadd.f32 %v1244, %v1278
      %v1303 = vadd.f32 %v1245, %v1279
      %v1304 = vadd.f32 %v1246, %v1280
      %v1305 = vadd.f32 %v1247, %v1281
      %v1306 = vadd.f32 %v1248, %v1282
      %v1307 = vadd.f32 %v1249, %v1283
      %v1308 = vadd.f32 %v1250, %v1284
      %v1309 = vadd.f32 %v1251, %v1285
      %v1310 = vadd.f32 %v1252, %v1286
      %v1311 = vrot.slane %v877, 7
      %v1312 = vrot.slane %v878, 7
      %v1313 = vrot.slane %v879, 7
      %v1314 = vsel %vm907, %v1312, %v1313
      %v1315 = vsel %vm907, %v1311, %v1312
      %v1316 = vsel %vm907, %v1313, %v1311
      %v1317 = vlaneseq
      %v1318 = vshrl.u32 %v1317, 7
      %v1319 = vsub.s32 6, %v1318
      %v1320 = vrot.slane %v880, %v1319
      %v1321 = vmul.f32 %v926, %v1320
      %v1322 = vmul.f32 %v918, %v1320
      %v1323 = vmul.f32 %v910, %v1320
      %v1324 = vmul.f32 %v927, %v1320
      %v1325 = vmul.f32 %v919, %v1320
      %v1326 = vmul.f32 %v911, %v1320
      %v1327 = vmul.f32 %v928, %v1320
      %v1328 = vmul.f32 %v920, %v1320
      %v1329 = vmul.f32 %v912, %v1320
      %v1330 = vmul.f32 %v929, %v1320
      %v1331 = vmul.f32 %v921, %v1320
      %v1332 = vmul.f32 %v913, %v1320
      %v1333 = vmul.f32 %v930, %v1320
      %v1334 = vmul.f32 %v922, %v1320
      %v1335 = vmul.f32 %v914, %v1320
      %v1336 = vmul.f32 %v931, %v1320
      %v1337 = vmul.f32 %v923, %v1320
      %v1338 = vmul.f32 %v915, %v1320
      %v1339 = vmul.f32 %v1148, %v1320
      %v1340 = vmul.f32 %v1147, %v1320
      %v1341 = vmul.f32 %v1146, %v1320
      %v1342 = vmul.f32 %v1316, %v1320
      %v1343 = vmul.f32 %v1315, %v1320
      %v1344 = vmul.f32 %v1314, %v1320
      %v1345 = vadd.f32 %v1287, %v1321
      %v1346 = vadd.f32 %v1288, %v1322
      %v1347 = vadd.f32 %v1289, %v1323
      %v1348 = vadd.f32 %v1290, %v1324
      %v1349 = vadd.f32 %v1291, %v1325
      %v1350 = vadd.f32 %v1292, %v1326
      %v1351 = vadd.f32 %v1293, %v1327
      %v1352 = vadd.f32 %v1294, %v1328
      %v1353 = vadd.f32 %v1295, %v1329
      %v1354 = vadd.f32 %v1296, %v1330
      %v1355 = vadd.f32 %v1297, %v1331
      %v1356 = vadd.f32 %v1298, %v1332
      %v1357 = vadd.f32 %v1299, %v1333
      %v1358 = vadd.f32 %v1300, %v1334
      %v1359 = vadd.f32 %v1301, %v1335
      %v1360 = vadd.f32 %v1302, %v1336
      %v1361 = vadd.f32 %v1303, %v1337
      %v1362 = vadd.f32 %v1304, %v1338
      %v1363 = vadd.f32 %v1305, %v1339
      %v1364 = vadd.f32 %v1306, %v1340
      %v1365 = vadd.f32 %v1307, %v1341
      %v1366 = vadd.f32 %v1308, %v1342
      %v1367 = vadd.f32 %v1309, %v1343
      %v1368 = vadd.f32 %v1310, %v1344
      %v1369 = vlaneseq
      %v1370 = vshrl.u32 %v1369, 7
      %v1371 = vsub.s32 7, %v1370
      %v1372 = vrot.slane %v880, %v1371
      %v1373 = vmul.f32 %v856, %v1372
      %v1374 = vmul.f32 %v857, %v1372
      %v1375 = vmul.f32 %v858, %v1372
      %v1376 = vmul.f32 %v859, %v1372
      %v1377 = vmul.f32 %v860, %v1372
      %v1378 = vmul.f32 %v861, %v1372
      %v1379 = vmul.f32 %v862, %v1372
      %v1380 = vmul.f32 %v863, %v1372
      %v1381 = vmul.f32 %v864, %v1372
      %v1382 = vmul.f32 %v865, %v1372
      %v1383 = vmul.f32 %v866, %v1372
      %v1384 = vmul.f32 %v867, %v1372
      %v1385 = vmul.f32 %v868, %v1372
      %v1386 = vmul.f32 %v869, %v1372
      %v1387 = vmul.f32 %v870, %v1372
      %v1388 = vmul.f32 %v871, %v1372
      %v1389 = vmul.f32 %v872, %v1372
      %v1390 = vmul.f32 %v873, %v1372
      %v1391 = vmul.f32 %v874, %v1372
      %v1392 = vmul.f32 %v875, %v1372
      %v1393 = vmul.f32 %v876, %v1372
      %v1394 = vmul.f32 %v877, %v1372
      %v1395 = vmul.f32 %v878, %v1372
      %v1396 = vmul.f32 %v879, %v1372
      %v1397 = vadd.f32 %v1345, %v1373
      %v1398 = vadd.f32 %v1346, %v1374
      %v1399 = vadd.f32 %v1347, %v1375
      %v1400 = vadd.f32 %v1348, %v1376
      %v1401 = vadd.f32 %v1349, %v1377
      %v1402 = vadd.f32 %v1350, %v1378
      %v1403 = vadd.f32 %v1351, %v1379
      %v1404 = vadd.f32 %v1352, %v1380
      %v1405 = vadd.f32 %v1353, %v1381
      %v1406 = vadd.f32 %v1354, %v1382
      %v1407 = vadd.f32 %v1355, %v1383
      %v1408 = vadd.f32 %v1356, %v1384
      %v1409 = vadd.f32 %v1357, %v1385
      %v1410 = vadd.f32 %v1358, %v1386
      %v1411 = vadd.f32 %v1359, %v1387
      %v1412 = vadd.f32 %v1360, %v1388
      %v1413 = vadd.f32 %v1361, %v1389
      %v1414 = vadd.f32 %v1362, %v1390
      %v1415 = vadd.f32 %v1363, %v1391
      %v1416 = vadd.f32 %v1364, %v1392
      %v1417 = vadd.f32 %v1365, %v1393
      %v1418 = vadd.f32 %v1366, %v1394
      %v1419 = vadd.f32 %v1367, %v1395
      %v1420 = vadd.f32 %v1368, %v1396
      %v1421 = vrot.slane %v877, 1
      %v1422 = vrot.slane %v878, 1
      %v1423 = vrot.slane %v879, 1
      %v1424 = vsel %vm1066, %v1422, %v1423
      %v1425 = vsel %vm1066, %v1421, %v1422
      %v1426 = vsel %vm1066, %v1423, %v1421
      %v1427 = vlaneseq
      %v1428 = vshrl.u32 %v1427, 7
      %v1429 = vsub.s32 0, %v1428
      %v1430 = vrot.slane %v881, %v1429
      %v1431 = vmul.f32 %v1077, %v1430
      %v1432 = vmul.f32 %v1069, %v1430
      %v1433 = vmul.f32 %v1085, %v1430
      %v1434 = vmul.f32 %v1078, %v1430
      %v1435 = vmul.f32 %v1070, %v1430
      %v1436 = vmul.f32 %v1086, %v1430
      %v1437 = vmul.f32 %v1079, %v1430
      %v1438 = vmul.f32 %v1071, %v1430
      %v1439 = vmul.f32 %v1087, %v1430
      %v1440 = vmul.f32 %v1080, %v1430
      %v1441 = vmul.f32 %v1072, %v1430
      %v1442 = vmul.f32 %v1088, %v1430
      %v1443 = vmul.f32 %v1081, %v1430
      %v1444 = vmul.f32 %v1073, %v1430
      %v1445 = vmul.f32 %v1089, %v1430
      %v1446 = vmul.f32 %v1082, %v1430
      %v1447 = vmul.f32 %v1074, %v1430
      %v1448 = vmul.f32 %v1090, %v1430
      %v1449 = vmul.f32 %v1257, %v1430
      %v1450 = vmul.f32 %v1256, %v1430
      %v1451 = vmul.f32 %v1258, %v1430
      %v1452 = vmul.f32 %v1425, %v1430
      %v1453 = vmul.f32 %v1424, %v1430
      %v1454 = vmul.f32 %v1426, %v1430
      %v1455 = vadd.f32 %v1397, %v1431
      %v1456 = vadd.f32 %v1398, %v1432
      %v1457 = vadd.f32 %v1399, %v1433
      %v1458 = vadd.f32 %v1400, %v1434
      %v1459 = vadd.f32 %v1401, %v1435
      %v1460 = vadd.f32 %v1402, %v1436
      %v1461 = vadd.f32 %v1403, %v1437
      %v1462 = vadd.f32 %v1404, %v1438
      %v1463 = vadd.f32 %v1405, %v1439
      %v1464 = vadd.f32 %v1406, %v1440
      %v1465 = vadd.f32 %v1407, %v1441
      %v1466 = vadd.f32 %v1408, %v1442
      %v1467 = vadd.f32 %v1409, %v1443
      %v1468 = vadd.f32 %v1410, %v1444
      %v1469 = vadd.f32 %v1411, %v1445
      %v1470 = vadd.f32 %v1412, %v1446
      %v1471 = vadd.f32 %v1413, %v1447
      %v1472 = vadd.f32 %v1414, %v1448
      %v1473 = vadd.f32 %v1415, %v1449
      %v1474 = vadd.f32 %v1416, %v1450
      %v1475 = vadd.f32 %v1417, %v1451
      %v1476 = vadd.f32 %v1418, %v1452
      %v1477 = vadd.f32 %v1419, %v1453
      %v1478 = vadd.f32 %v1420, %v1454
      %v1479 = vmax.f32 %v1455, 0.0
      %v1480 = vmax.f32 %v1456, 0.0
      %v1481 = vmax.f32 %v1457, 0.0
      %v1482 = vmax.f32 %v1458, 0.0
      %v1483 = vmax.f32 %v1459, 0.0
      %v1484 = vmax.f32 %v1460, 0.0
      %v1485 = vmax.f32 %v1461, 0.0
      %v1486 = vmax.f32 %v1462, 0.0
      %v1487 = vmax.f32 %v1463, 0.0
      %v1488 = vmax.f32 %v1464, 0.0
      %v1489 = vmax.f32 %v1465, 0.0
      %v1490 = vmax.f32 %v1466, 0.0
      %v1491 = vmax.f32 %v1467, 0.0
      %v1492 = vmax.f32 %v1468, 0.0
      %v1493 = vmax.f32 %v1469, 0.0
      %v1494 = vmax.f32 %v1470, 0.0
      %v1495 = vmax.f32 %v1471, 0.0
      %v1496 = vmax.f32 %v1472, 0.0
      %v1497 = vmax.f32 %v1473, 0.0
      %v1498 = vmax.f32 %v1474, 0.0
      %v1499 = vmax.f32 %v1475, 0.0
      %v1500 = vmax.f32 %v1476, 0.0
      %v1501 = vmax.f32 %v1477, 0.0
      %v1502 = vmax.f32 %v1478, 0.0
      %v1503 = vmin.f32 %v1479, 6.0
      %v1504 = vmin.f32 %v1480, 6.0
      %v1505 = vmin.f32 %v1481, 6.0
      %v1506 = vmin.f32 %v1482, 6.0
      %v1507 = vmin.f32 %v1483, 6.0
      %v1508 = vmin.f32 %v1484, 6.0
      %v1509 = vmin.f32 %v1485, 6.0
      %v1510 = vmin.f32 %v1486, 6.0
      %v1511 = vmin.f32 %v1487, 6.0
      %v1512 = vmin.f32 %v1488, 6.0
      %v1513 = vmin.f32 %v1489, 6.0
      %v1514 = vmin.f32 %v1490, 6.0
      %v1515 = vmin.f32 %v1491, 6.0
      %v1516 = vmin.f32 %v1492, 6.0
      %v1517 = vmin.f32 %v1493, 6.0
      %v1518 = vmin.f32 %v1494, 6.0
      %v1519 = vmin.f32 %v1495, 6.0
      %v1520 = vmin.f32 %v1496, 6.0
      %v1521 = vmin.f32 %v1497, 6.0
      %v1522 = vmin.f32 %v1498, 6.0
      %v1523 = vmin.f32 %v1499, 6.0
      %v1524 = vmin.f32 %v1500, 6.0
      %v1525 = vmin.f32 %v1501, 6.0
      %v1526 = vmin.f32 %v1502, 6.0
      %v1527 = vld [vmem:[%s5] sm:$0xff]
      %v1528 = vld [vmem:[%s5 + $0x8] sm:$0xff]
      %vm1529 = vcmask 130048
      %v1531 = vsel %vm1529, %v1503, 0
      %v1534 = vsel %vm1529, %v1504, 0
      %v1537 = vsel %vm1529, %v1505, 0
      %v1540 = vsel %vm1529, %v1506, 0
      %v1543 = vsel %vm1529, %v1507, 0
      %v1546 = vsel %vm1529, %v1508, 0
      %v1549 = vsel %vm1529, %v1509, 0
      %v1552 = vsel %vm1529, %v1510, 0
      %v1555 = vsel %vm1529, %v1511, 0
      %v1558 = vsel %vm1529, %v1512, 0
      %v1561 = vsel %vm1529, %v1513, 0
      %v1564 = vsel %vm1529, %v1514, 0
      %v1567 = vsel %vm1529, %v1515, 0
      %v1570 = vsel %vm1529, %v1516, 0
      %v1573 = vsel %vm1529, %v1517, 0
      %v1576 = vsel %vm1529, %v1518, 0
      %v1579 = vsel %vm1529, %v1519, 0
      %v1582 = vsel %vm1529, %v1520, 0
      %v1585 = vsel %vm1529, %v1521, 0
      %v1588 = vsel %vm1529, %v1522, 0
      %v1591 = vsel %vm1529, %v1523, 0
      %v1594 = vsel %vm1529, %v1524, 0
      %v1597 = vsel %vm1529, %v1525, 0
      %v1600 = vsel %vm1529, %v1526, 0
      %1602 = vmatprep.subr.mxu0 0.0
      %1603 = vmatpush1.msra.mxu0 0.0
      %1604 = vmatprep.subr.mxu0 0.0
      %1605 = vmatpush1.msra.mxu0 0.0
      %1606 = vmatprep.subr.mxu0 0.0
      %1607 = vmatpush1.msra.mxu0 0.0
      %1608 = vmatprep.subr.mxu0 0.0
      %1609 = vmatpush1.msra.mxu0 0.0
      %1610 = vmatprep.subr.mxu0 0.0
      %1611 = vmatpush1.msra.mxu0 0.0
      %1612 = vmatprep.subr.mxu0 0.0
      %1613 = vmatpush1.msra.mxu0 0.0
      %1614 = vmatprep.subr.mxu0 0.0
      %1615 = vmatpush1.msra.mxu0 0.0
      %1616 = vmatprep.subr.mxu0 0.0
      %1617 = vmatpush1.msra.mxu0 0.0
      %1618 = vmatprep.subr.mxu0 0.0
      %1619 = vmatpush1.msra.mxu0 0.0
      %1620 = vmatprep.subr.mxu0 0.0
      %1621 = vmatpush1.msra.mxu0 0.0
      %1622 = vmatprep.subr.mxu0 0.0
      %1623 = vmatpush1.msra.mxu0 0.0
      %1624 = vmatprep.subr.mxu0 0.0
      %1625 = vmatpush1.msra.mxu0 0.0
      %1626 = vmatprep.subr.mxu0 0.0
      %1627 = vmatpush1.msra.mxu0 0.0
      %1628 = vmatprep.subr.mxu0 0.0
      %1629 = vmatpush1.msra.mxu0 0.0
      %1630 = vmatprep.subr.mxu0 0.0
      %1631 = vmatpush1.msra.mxu0 %v1528
      %1632 = vmatprep.subr.mxu0 0.0
      %1633 = vmatpush1.msra.mxu0 %v1527
      %1634 = vmatprep.subr.mxu0 0.0
      %1635 = vmatpush2.msra.mxu0 0.0
      %1636 = vmatprep.subr.mxu0 0.0
      %1637 = vmatpush2.msra.mxu0 0.0
      %1638 = vmatprep.subr.mxu0 0.0
      %1639 = vmatpush2.msra.mxu0 0.0
      %1640 = vmatprep.subr.mxu0 0.0
      %1641 = vmatpush2.msra.mxu0 0.0
      %1642 = vmatprep.subr.mxu0 0.0
      %1643 = vmatpush2.msra.mxu0 0.0
      %1644 = vmatprep.subr.mxu0 0.0
      %1645 = vmatpush2.msra.mxu0 0.0
      %1646 = vmatprep.subr.mxu0 0.0
      %1647 = vmatpush2.msra.mxu0 0.0
      %1648 = vmatprep.subr.mxu0 0.0
      %1649 = vmatpush2.msra.mxu0 0.0
      %1650 = vmatprep.subr.mxu0 0.0
      %1651 = vmatpush2.msra.mxu0 0.0
      %1652 = vmatprep.subr.mxu0 0.0
      %1653 = vmatpush2.msra.mxu0 0.0
      %1654 = vmatprep.subr.mxu0 0.0
      %1655 = vmatpush2.msra.mxu0 0.0
      %1656 = vmatprep.subr.mxu0 0.0
      %1657 = vmatpush2.msra.mxu0 0.0
      %1658 = vmatprep.subr.mxu0 0.0
      %1659 = vmatpush2.msra.mxu0 0.0
      %1660 = vmatprep.subr.mxu0 0.0
      %1661 = vmatpush2.msra.mxu0 0.0
      %1662 = vmatprep.subr.mxu0 0.0
      %1663 = vmatpush2.msra.mxu0 0.0
      %1664 = vmatprep.subr.mxu0 0.0
      %1665 = vmatpush2.msra.mxu0 0.0
      %1666 = vmatprep.mubr.f32.mxu0 0.0
      %1667 = vmatmul.mubr.f32.gmra.mxu0 %v1531
      %v1668 = vpop.f32.mrf.mxu0
      %v1669 = vadd.f32 0.0, %v1668
      %v1670 = vpop.f32.mrf.mxu0
      %1671 = vmatprep.mubr.f32.mxu0 0.0
      %1672 = vmatmul.mubr.f32.gmra.mxu0 %v1534
      %v1673 = vpop.f32.mrf.mxu0
      %v1674 = vadd.f32 0.0, %v1673
      %v1675 = vpop.f32.mrf.mxu0
      %1676 = vmatprep.mubr.f32.mxu0 0.0
      %1677 = vmatmul.mubr.f32.gmra.mxu0 %v1537
      %v1678 = vpop.f32.mrf.mxu0
      %v1679 = vadd.f32 0.0, %v1678
      %v1680 = vpop.f32.mrf.mxu0
      %1681 = vmatprep.mubr.f32.mxu0 0.0
      %1682 = vmatmul.mubr.f32.gmra.mxu0 %v1540
      %v1683 = vpop.f32.mrf.mxu0
      %v1684 = vadd.f32 0.0, %v1683
      %v1685 = vpop.f32.mrf.mxu0
      %1686 = vmatprep.mubr.f32.mxu0 0.0
      %1687 = vmatmul.mubr.f32.gmra.mxu0 %v1543
      %v1688 = vpop.f32.mrf.mxu0
      %v1689 = vadd.f32 0.0, %v1688
      %v1690 = vpop.f32.mrf.mxu0
      %1691 = vmatprep.mubr.f32.mxu0 0.0
      %1692 = vmatmul.mubr.f32.gmra.mxu0 %v1546
      %v1693 = vpop.f32.mrf.mxu0
      %v1694 = vadd.f32 0.0, %v1693
      %v1695 = vpop.f32.mrf.mxu0
      %1696 = vmatprep.mubr.f32.mxu0 0.0
      %1697 = vmatmul.mubr.f32.gmra.mxu0 %v1549
      %v1698 = vpop.f32.mrf.mxu0
      %v1699 = vadd.f32 0.0, %v1698
      %v1700 = vpop.f32.mrf.mxu0
      %1701 = vmatprep.mubr.f32.mxu0 0.0
      %1702 = vmatmul.mubr.f32.gmra.mxu0 %v1552
      %v1703 = vpop.f32.mrf.mxu0
      %v1704 = vadd.f32 0.0, %v1703
      %v1705 = vpop.f32.mrf.mxu0
      %1706 = vmatprep.mubr.f32.mxu0 0.0
      %1707 = vmatmul.mubr.f32.gmra.mxu0 %v1555
      %v1708 = vpop.f32.mrf.mxu0
      %v1709 = vadd.f32 0.0, %v1708
      %v1710 = vpop.f32.mrf.mxu0
      %1711 = vmatprep.mubr.f32.mxu0 0.0
      %1712 = vmatmul.mubr.f32.gmra.mxu0 %v1558
      %v1713 = vpop.f32.mrf.mxu0
      %v1714 = vadd.f32 0.0, %v1713
      %v1715 = vpop.f32.mrf.mxu0
      %1716 = vmatprep.mubr.f32.mxu0 0.0
      %1717 = vmatmul.mubr.f32.gmra.mxu0 %v1561
      %v1718 = vpop.f32.mrf.mxu0
      %v1719 = vadd.f32 0.0, %v1718
      %v1720 = vpop.f32.mrf.mxu0
      %1721 = vmatprep.mubr.f32.mxu0 0.0
      %1722 = vmatmul.mubr.f32.gmra.mxu0 %v1564
      %v1723 = vpop.f32.mrf.mxu0
      %v1724 = vadd.f32 0.0, %v1723
      %v1725 = vpop.f32.mrf.mxu0
      %1726 = vmatprep.mubr.f32.mxu0 0.0
      %1727 = vmatmul.mubr.f32.gmra.mxu0 %v1567
      %v1728 = vpop.f32.mrf.mxu0
      %v1729 = vadd.f32 0.0, %v1728
      %v1730 = vpop.f32.mrf.mxu0
      %1731 = vmatprep.mubr.f32.mxu0 0.0
      %1732 = vmatmul.mubr.f32.gmra.mxu0 %v1570
      %v1733 = vpop.f32.mrf.mxu0
      %v1734 = vadd.f32 0.0, %v1733
      %v1735 = vpop.f32.mrf.mxu0
      %1736 = vmatprep.mubr.f32.mxu0 0.0
      %1737 = vmatmul.mubr.f32.gmra.mxu0 %v1573
      %v1738 = vpop.f32.mrf.mxu0
      %v1739 = vadd.f32 0.0, %v1738
      %v1740 = vpop.f32.mrf.mxu0
      %1741 = vmatprep.mubr.f32.mxu0 0.0
      %1742 = vmatmul.mubr.f32.gmra.mxu0 %v1576
      %v1743 = vpop.f32.mrf.mxu0
      %v1744 = vadd.f32 0.0, %v1743
      %v1745 = vpop.f32.mrf.mxu0
      %1746 = vmatprep.mubr.f32.mxu0 0.0
      %1747 = vmatmul.mubr.f32.gmra.mxu0 %v1579
      %v1748 = vpop.f32.mrf.mxu0
      %v1749 = vadd.f32 0.0, %v1748
      %v1750 = vpop.f32.mrf.mxu0
      %1751 = vmatprep.mubr.f32.mxu0 0.0
      %1752 = vmatmul.mubr.f32.gmra.mxu0 %v1582
      %v1753 = vpop.f32.mrf.mxu0
      %v1754 = vadd.f32 0.0, %v1753
      %v1755 = vpop.f32.mrf.mxu0
      %1756 = vmatprep.mubr.f32.mxu0 0.0
      %1757 = vmatmul.mubr.f32.gmra.mxu0 %v1585
      %v1758 = vpop.f32.mrf.mxu0
      %v1759 = vadd.f32 0.0, %v1758
      %v1760 = vpop.f32.mrf.mxu0
      %1761 = vmatprep.mubr.f32.mxu0 0.0
      %1762 = vmatmul.mubr.f32.gmra.mxu0 %v1588
      %v1763 = vpop.f32.mrf.mxu0
      %v1764 = vadd.f32 0.0, %v1763
      %v1765 = vpop.f32.mrf.mxu0
      %1766 = vmatprep.mubr.f32.mxu0 0.0
      %1767 = vmatmul.mubr.f32.gmra.mxu0 %v1591
      %v1768 = vpop.f32.mrf.mxu0
      %v1769 = vadd.f32 0.0, %v1768
      %v1770 = vpop.f32.mrf.mxu0
      %1771 = vmatprep.mubr.f32.mxu0 0.0
      %1772 = vmatmul.mubr.f32.gmra.mxu0 %v1594
      %v1773 = vpop.f32.mrf.mxu0
      %v1774 = vadd.f32 0.0, %v1773
      %v1775 = vpop.f32.mrf.mxu0
      %1776 = vmatprep.mubr.f32.mxu0 0.0
      %1777 = vmatmul.mubr.f32.gmra.mxu0 %v1597
      %v1778 = vpop.f32.mrf.mxu0
      %v1779 = vadd.f32 0.0, %v1778
      %v1780 = vpop.f32.mrf.mxu0
      %1781 = vmatprep.mubr.f32.mxu0 0.0
      %1782 = vmatmul.mubr.f32.gmra.mxu0 %v1600
      %v1783 = vpop.f32.mrf.mxu0
      %v1784 = vadd.f32 0.0, %v1783
      %v1785 = vpop.f32.mrf.mxu0
      %1786 = vdwg.mxu0
      %v1787 = vld [vmem:[%s6] sm:$0x1]
      %v1789 = vlaneseq
      %v1790 = vshrl.u32 %v1789, 7
      %v1791 = vsub.s32 0, %v1790
      %v1792 = vrot.slane %v1787, %v1791
      %v1794 = vadd.f32 %v1669, %v1792
      %v1795 = vadd.f32 %v1674, %v1792
      %v1796 = vadd.f32 %v1679, %v1792
      %v1797 = vadd.f32 %v1684, %v1792
      %v1798 = vadd.f32 %v1689, %v1792
      %v1799 = vadd.f32 %v1694, %v1792
      %v1800 = vadd.f32 %v1699, %v1792
      %v1801 = vadd.f32 %v1704, %v1792
      %v1802 = vadd.f32 %v1709, %v1792
      %v1803 = vadd.f32 %v1714, %v1792
      %v1804 = vadd.f32 %v1719, %v1792
      %v1805 = vadd.f32 %v1724, %v1792
      %v1806 = vadd.f32 %v1729, %v1792
      %v1807 = vadd.f32 %v1734, %v1792
      %v1808 = vadd.f32 %v1739, %v1792
      %v1809 = vadd.f32 %v1744, %v1792
      %v1810 = vadd.f32 %v1749, %v1792
      %v1811 = vadd.f32 %v1754, %v1792
      %v1812 = vadd.f32 %v1759, %v1792
      %v1813 = vadd.f32 %v1764, %v1792
      %v1814 = vadd.f32 %v1769, %v1792
      %v1815 = vadd.f32 %v1774, %v1792
      %v1816 = vadd.f32 %v1779, %v1792
      %v1817 = vadd.f32 %v1784, %v1792
      %v1818 = vadd.f32 %v1794, %v310
      %v1819 = vadd.f32 %v1795, %v311
      %v1820 = vadd.f32 %v1796, %v312
      %v1821 = vadd.f32 %v1797, %v313
      %v1822 = vadd.f32 %v1798, %v314
      %v1823 = vadd.f32 %v1799, %v315
      %v1824 = vadd.f32 %v1800, %v316
      %v1825 = vadd.f32 %v1801, %v317
      %v1826 = vadd.f32 %v1802, %v318
      %v1827 = vadd.f32 %v1803, %v319
      %v1828 = vadd.f32 %v1804, %v320
      %v1829 = vadd.f32 %v1805, %v321
      %v1830 = vadd.f32 %v1806, %v322
      %v1831 = vadd.f32 %v1807, %v323
      %v1832 = vadd.f32 %v1808, %v324
      %v1833 = vadd.f32 %v1809, %v325
      %v1834 = vadd.f32 %v1810, %v326
      %v1835 = vadd.f32 %v1811, %v327
      %v1836 = vadd.f32 %v1812, %v328
      %v1837 = vadd.f32 %v1813, %v329
      %v1838 = vadd.f32 %v1814, %v330
      %v1839 = vadd.f32 %v1815, %v331
      %v1840 = vadd.f32 %v1816, %v332
      %v1841 = vadd.f32 %v1817, %v333
      %1842 = vst.msk [vmem:[%s302] sm:$0xff] %vm338, %v1818
      %1843 = vst.msk [vmem:[%s302 + $0x8] sm:$0xff] %vm338, %v1819
      %1844 = vst.msk [vmem:[%s302 + $0x10] sm:$0xff] %vm338, %v1820
      %1845 = vst.msk [vmem:[%s302 + $0x18] sm:$0xff] %vm338, %v1821
      %1846 = vst.msk [vmem:[%s302 + $0x20] sm:$0xff] %vm338, %v1822
      %1847 = vst.msk [vmem:[%s302 + $0x28] sm:$0xff] %vm338, %v1823
      %1848 = vst.msk [vmem:[%s302 + $0x30] sm:$0xff] %vm338, %v1824
      %1849 = vst.msk [vmem:[%s302 + $0x38] sm:$0xff] %vm338, %v1825
      %1850 = vst.msk [vmem:[%s302 + $0x40] sm:$0xff] %vm338, %v1826
      %1851 = vst.msk [vmem:[%s302 + $0x48] sm:$0xff] %vm338, %v1827
      %1852 = vst.msk [vmem:[%s302 + $0x50] sm:$0xff] %vm338, %v1828
      %1853 = vst.msk [vmem:[%s302 + $0x58] sm:$0xff] %vm338, %v1829
      %1854 = vst.msk [vmem:[%s302 + $0x60] sm:$0xff] %vm338, %v1830
      %1855 = vst.msk [vmem:[%s302 + $0x68] sm:$0xff] %vm338, %v1831
      %1856 = vst.msk [vmem:[%s302 + $0x70] sm:$0xff] %vm338, %v1832
      %1857 = vst.msk [vmem:[%s302 + $0x78] sm:$0xff] %vm338, %v1833
      %1858 = vst.msk [vmem:[%s302 + $0x80] sm:$0xff] %vm338, %v1834
      %1859 = vst.msk [vmem:[%s302 + $0x88] sm:$0xff] %vm338, %v1835
      %1860 = vst.msk [vmem:[%s302 + $0x90] sm:$0xff] %vm338, %v1836
      %1861 = vst.msk [vmem:[%s302 + $0x98] sm:$0xff] %vm338, %v1837
      %1862 = vst.msk [vmem:[%s302 + $0xa0] sm:$0xff] %vm338, %v1838
      %1863 = vst.msk [vmem:[%s302 + $0xa8] sm:$0xff] %vm338, %v1839
      %1864 = vst.msk [vmem:[%s302 + $0xb0] sm:$0xff] %vm338, %v1840
      %1865 = vst.msk [vmem:[%s302 + $0xb8] sm:$0xff] %vm338, %v1841
      %s1866 = smul.u32 8, %s23
      %p1867 = scmp.lt.s32.totalorder %s22, 1
      %s1868 = scalar_select %p1867, %s22, 1
      %p1869 = scmp.lt.s32.totalorder %s1866, 15
      %s1870 = scalar_select %p1869, %s1866, 15
      %s1871 = smul.addr %s1870, 3
      %s1872 = smul.addr %s1868, 48
      %s1873 = sadd.s32 %s1871, %s1872
      %s1874 = smul.addr %s1873, 8
      %s1875 = scalar_lea.vmem %s7, %s1874
      // Predicated region
      $region49: #{tpu_custom_call.1} parent=47 // pred_check
        %p1876 = pneg %p202
      $region50: #{tpu_custom_call.1} parent=47 // pred_check_branch
        %1878 = sbr.rel (%p1876) target = $region52
      $region51: #{tpu_custom_call.1} parent=47 // pred_region
        %s1879 = smul.u32 8, %s23
      $region52: #{tpu_custom_call.1} parent=47 // pred_fallthru
        _
    $region48: #{tpu_custom_call.1} parent=5 // pred_fallthru
      _
    %p1880 = scmp.le.s32.totalorder 2, %s13
    // Predicated region
    $region53: #{tpu_custom_call.1} parent=5 // pred_check
      %p1881 = pneg %p1880
    $region54: #{tpu_custom_call.1} parent=5 // pred_check_branch
      %1883 = sbr.rel (%p1881) target = $region56
    $region55: #{tpu_custom_call.1} parent=5 // pred_region
      %s1884 = ssub.s32 %s13, 2
      // Predicated region
      $region57: #{tpu_custom_call.1} parent=55 // pred_check
        %p1885 = pneg %p208
      $region58: #{tpu_custom_call.1} parent=55 // pred_check_branch
        %1887 = sbr.rel (%p1885) target = $region60
      $region59: #{tpu_custom_call.1} parent=55 // pred_region
        %s1888 = smul.u32 8, %s25
        %p1889 = scmp.lt.s32.totalorder %s24, 1
        %s1890 = scalar_select %p1889, %s24, 1
        %p1891 = scmp.lt.s32.totalorder %s1888, 15
        %s1892 = scalar_select %p1891, %s1888, 15
        %s1893 = smul.addr %s1892, 3
        %s1894 = smul.addr %s1890, 48
        %s1895 = sadd.s32 %s1893, %s1894
        %s1896 = smul.addr %s1895, 8
        %s1897 = scalar_lea.vmem %s7, %s1896
      $region60: #{tpu_custom_call.1} parent=55 // pred_fallthru
        _
    $region56: #{tpu_custom_call.1} parent=5 // pred_fallthru
      _
  $region6: #{tpu_custom_call.1} parent=0 // loop_footer
    %s17 = sadd.s32 1, %s13
  $region7: #{tpu_custom_call.1} parent=0 // loop_footer_branch
    %12 = sbr.rel target = $region3
  $region8: #{tpu_custom_call.1} parent=0 // loop_exit
    _

</llo_original>
